<compile_context>
chip_gen: v7x
topology: tpu7x:2x2x1
jax: 0.10.0
libtpu: 0.0.40
codegen_flags: <defaults>
</compile_context>

<pallas_src>
import jax
import jax.numpy as jnp
from jax.experimental import pallas as pl
from jax.experimental.pallas import tpu as pltpu


def _round_up(x, m):
    return ((x + m - 1) // m) * m


# ----------------------------------------------------------------------------
# Fused kernel: one grid step processes a (BB, T*E) batch tile and emits both
# the rating column and the classifier logits for that tile.
# ----------------------------------------------------------------------------
def fused_kernel(u_emb_ref, i_emb_ref, u_aux_ref, i_aux_ref,
                 sel_ref, w_u_ref, w_i_ref, b_ref,
                 rating_ref, logits_ref):
    T = sel_ref.shape[1]

    u = u_emb_ref[...]                                   # (BB, T*E) f32, lane-dense
    i = i_emb_ref[...]                                   # (BB, T*E)

    # per-(b, t) dot over E: elementwise product on full vregs, then reduce
    # over E on the MXU via the (T*E, T) 0/1 selector (no XLU sublane sums).
    prod = u * i
    dot_t = jnp.dot(prod, sel_ref[...],
                    preferred_element_type=jnp.float32,
                    precision=jax.lax.Precision.HIGHEST)             # (BB, T)

    # Packed aux rows: lanes [0:T] = aspect bias, lanes [T:2T] = coeff.
    # Global bias/coeff were folded into the item table at prepare time, so a
    # single VPU add combines everything.
    aux = u_aux_ref[...] + i_aux_ref[...]                            # (BB, 2T)
    bias = aux[:, :T]                                                # (BB, T)
    coeff = aux[:, T:]                                               # (BB, T)

    score = jax.nn.sigmoid(dot_t + bias)                             # (BB, T)
    rating_ref[...] = jnp.sum(score * coeff, axis=1, keepdims=True)  # (BB, 1)

    # sum-over-T folded into the classifier matmul via pre-tiled (T*E, R)
    # weights: concat-free, two K=256 MXU passes, no jnp.sum(axis=1).
    logits_ref[...] = (
        jnp.dot(u, w_u_ref[...], preferred_element_type=jnp.float32,
                precision=jax.lax.Precision.HIGHEST)
        + jnp.dot(i, w_i_ref[...], preferred_element_type=jnp.float32,
                  precision=jax.lax.Precision.HIGHEST)
        + b_ref[...])                                                # (BB, R)


# ----------------------------------------------------------------------------
# One-time parameter preparation (flatten / transpose / tile / pack — hoisted
# out of the per-call path).
# ----------------------------------------------------------------------------
def prepare_params(params):
    U, T, E = params["user_tag_embeddings"].shape
    I = params["item_tag_embeddings"].shape[0]
    R = params["rating_classifier_w"].shape[0]
    TE = T * E

    w = params["rating_classifier_w"]                    # (R, 2E); y = x @ W^T + b
    w_u = w[:, :E].T                                     # (E, R)
    w_i = w[:, E:].T                                     # (E, R)

    # Packed per-entity aux tables: [aspect_bias | coeff] along lanes.
    # Globals are folded into the item table so the kernel adds just two rows.
    u_aux = jnp.concatenate(
        [params["user_aspect_bias"], params["user_coeff"]], axis=1)          # (U, 2T)
    i_aux = jnp.concatenate(
        [params["item_aspect_bias"] + params["global_aspect_bias"],
         params["item_coeff"] + params["global_coeff"]], axis=1)             # (I, 2T)

    return dict(
        u_emb_flat=params["user_tag_embeddings"].reshape(U, TE),
        i_emb_flat=params["item_tag_embeddings"].reshape(I, TE),
        u_aux=u_aux,
        i_aux=i_aux,
        # (T*E, T) block-indicator: sel[t*E + e, t] = 1  -> MXU reduce over E
        sel=jnp.repeat(jnp.eye(T, dtype=jnp.float32), E, axis=0),
        # (T*E, R) tiled halves: u_flat @ w_u_tiled == sum_t(u_emb_t) @ w_u
        w_u_tiled=jnp.tile(w_u, (T, 1)),
        w_i_tiled=jnp.tile(w_i, (T, 1)),
        b=params["rating_classifier_b"].reshape(1, R),
    )


# ----------------------------------------------------------------------------
# Fused wrapper: gathers flattened rows in JAX (lane-dense 1 KiB rows), tiles
# the batch, runs ONE pallas_call returning (rating, logits).
# ----------------------------------------------------------------------------
def predict_rating_and_discretized(prepared, user, item, *, block_b=1024):
    B = user.shape[0]
    TE = prepared["u_emb_flat"].shape[1]
    T = prepared["sel"].shape[1]
    R = prepared["b"].shape[1]

    # Batch tile: multiple of 8 sublanes; biggest tile that comfortably fits
    # VMEM (1024*256*4B = 1 MiB per emb tile, ~4.5 MiB double-buffered total).
    BB = _round_up(min(block_b, _round_up(B, 8)), 8)
    Bp = _round_up(B, BB)
    pad = Bp - B
    user_p = jnp.pad(user, (0, pad))          # padded rows index 0; sliced off below
    item_p = jnp.pad(item, (0, pad))

    u_emb = prepared["u_emb_flat"][user_p]    # (Bp, T*E)
    i_emb = prepared["i_emb_flat"][item_p]    # (Bp, T*E)
    u_aux = prepared["u_aux"][user_p]         # (Bp, 2T)
    i_aux = prepared["i_aux"][item_p]         # (Bp, 2T)

    emb_spec = pl.BlockSpec((BB, TE), lambda b: (b, 0))
    aux_spec = pl.BlockSpec((BB, 2 * T), lambda b: (b, 0))
    sel_spec = pl.BlockSpec((TE, T), lambda b: (0, 0))
    w_spec = pl.BlockSpec((TE, R), lambda b: (0, 0))
    cb_spec = pl.BlockSpec((1, R), lambda b: (0, 0))

    rating_p, logits_p = pl.pallas_call(
        fused_kernel,
        grid=(Bp // BB,),
        in_specs=[emb_spec, emb_spec, aux_spec, aux_spec,
                  sel_spec, w_spec, w_spec, cb_spec],
        out_specs=(pl.BlockSpec((BB, 1), lambda b: (b, 0)),
                   pl.BlockSpec((BB, R), lambda b: (b, 0))),
        out_shape=(jax.ShapeDtypeStruct((Bp, 1), jnp.float32),
                   jax.ShapeDtypeStruct((Bp, R), jnp.float32)),
        compiler_params=pltpu.CompilerParams(
            dimension_semantics=("parallel",),
            vmem_limit_bytes=32 * 1024 * 1024),
    )(u_emb, i_emb, u_aux, i_aux,
      prepared["sel"], prepared["w_u_tiled"], prepared["w_i_tiled"],
      prepared["b"])

    return rating_p[:B, 0], logits_p[:B]


# Compatibility wrappers matching the module's individual prediction methods.
def predict_rating(prepared, user, item, **kw):
    return predict_rating_and_discretized(prepared, user, item, **kw)[0]


def predict_discretized_rating(prepared, user, item, **kw):
    return predict_rating_and_discretized(prepared, user, item, **kw)[1]


# ----------------------------------------------------------------------------
# Deterministic parameter init (mirrors _init_weights)
# ----------------------------------------------------------------------------
def init_params(key, *, user_num, item_num, tag_num, embedding_size, rating_num):
    ks = jax.random.split(key, 10)
    nrm = lambda k, shape, mean, std: mean + std * jax.random.normal(k, shape, jnp.float32)
    return {
        "user_tag_embeddings": nrm(ks[0], (user_num, tag_num, embedding_size), 0.0, 0.01),
        "item_tag_embeddings": nrm(ks[1], (item_num, tag_num, embedding_size), 0.0, 0.01),
        "user_aspect_bias":    nrm(ks[2], (user_num, tag_num), 0.0, 0.01),
        "item_aspect_bias":    nrm(ks[3], (item_num, tag_num), 0.0, 0.01),
        "global_aspect_bias":  nrm(ks[4], (1, tag_num), 0.0, 0.01),
        "user_coeff":          nrm(ks[5], (user_num, tag_num), 0.0, 0.01),
        "item_coeff":          nrm(ks[6], (item_num, tag_num), 0.0, 0.01),
        "global_coeff":        nrm(ks[7], (1, tag_num), 1.0 / tag_num, 0.01),
        # nn.Linear(2E, R): weight (R, 2E), bias (R,)
        "rating_classifier_w": nrm(ks[8], (rating_num, 2 * embedding_size), 0.0, 0.05),
        "rating_classifier_b": nrm(ks[9], (rating_num,), 0.0, 0.05),
    }


# ----------------------------------------------------------------------------
# Pure-JAX references (match the PyTorch forward semantics)
# ----------------------------------------------------------------------------
def predict_rating_ref(params, user, item):
    u_emb = params["user_tag_embeddings"][user]
    i_emb = params["item_tag_embeddings"][item]
    score = (jnp.sum(u_emb * i_emb, axis=2)
             + params["user_aspect_bias"][user]
             + params["item_aspect_bias"][item]
             + params["global_aspect_bias"])
    score = jax.nn.sigmoid(score)
    coeff = (params["user_coeff"][user]
             + params["item_coeff"][item]
             + params["global_coeff"])
    return jnp.sum(score * coeff, axis=1)


def predict_discretized_rating_ref(params, user, item):
    u_sum = jnp.sum(params["user_tag_embeddings"][user], axis=1)
    i_sum = jnp.sum(params["item_tag_embeddings"][item], axis=1)
    x = jnp.concatenate([u_sum, i_sum], axis=1)
    return (jnp.dot(x, params["rating_classifier_w"].T,
                    precision=jax.lax.Precision.HIGHEST)
            + params["rating_classifier_b"])


# ----------------------------------------------------------------------------
if __name__ == "__main__":
    cfg = dict(user_num=8, item_num=10, tag_num=8, embedding_size=32,
               rating_num=5)
    key = jax.random.PRNGKey(0)
    pkey, ukey, ikey, ukey2, ikey2 = jax.random.split(key, 5)
    params = init_params(pkey, **cfg)
    prepared = prepare_params(params)

    # Case 1: small batch, single grid step.
    B = 4
    user = jax.random.randint(ukey, (B,), 0, cfg["user_num"])
    item = jax.random.randint(ikey, (B,), 0, cfg["item_num"])
    rating, logits = predict_rating_and_discretized(prepared, user, item)
    (rating, logits) = jax.block_until_ready((rating, logits))

    rating_ref = predict_rating_ref(params, user, item)
    logits_ref = predict_discretized_rating_ref(params, user, item)
    assert rating.shape == (B,)
    assert logits.shape == (B, cfg["rating_num"])
    assert jnp.allclose(rating, rating_ref, atol=2e-5, rtol=1e-4)
    assert jnp.allclose(logits, logits_ref, atol=2e-5, rtol=1e-4)

    # Case 2: multi-block grid with batch padding (exercises the pipeline).
    B2 = 20
    user2 = jax.random.randint(ukey2, (B2,), 0, cfg["user_num"])
    item2 = jax.random.randint(ikey2, (B2,), 0, cfg["item_num"])
    rating2, logits2 = predict_rating_and_discretized(
        prepared, user2, item2, block_b=8)
    (rating2, logits2) = jax.block_until_ready((rating2, logits2))

    rating2_ref = predict_rating_ref(params, user2, item2)
    logits2_ref = predict_discretized_rating_ref(params, user2, item2)
    assert rating2.shape == (B2,)
    assert logits2.shape == (B2, cfg["rating_num"])
    assert jnp.allclose(rating2, rating2_ref, atol=2e-5, rtol=1e-4)
    assert jnp.allclose(logits2, logits2_ref, atol=2e-5, rtol=1e-4)

    print("KERNEL_OK")
</pallas_src>

<mosaic_0001>
module attributes {stable_mosaic.version = 11 : i64} {
  func.func @fused_kernel(%arg0: i32, %arg1: memref<8x256xf32, #tpu.memory_space<vmem>>, %arg2: memref<8x256xf32, #tpu.memory_space<vmem>>, %arg3: memref<8x16xf32, #tpu.memory_space<vmem>>, %arg4: memref<8x16xf32, #tpu.memory_space<vmem>>, %arg5: memref<256x8xf32, #tpu.memory_space<vmem>>, %arg6: memref<256x5xf32, #tpu.memory_space<vmem>>, %arg7: memref<256x5xf32, #tpu.memory_space<vmem>>, %arg8: memref<1x5xf32, #tpu.memory_space<vmem>>, %arg9: memref<8x1xf32, #tpu.memory_space<vmem>>, %arg10: memref<8x5xf32, #tpu.memory_space<vmem>>) attributes {dimension_semantics = [#tpu.dimension_semantics<parallel>], iteration_bounds = array<i64: 1>, scalar_prefetch = 0 : i64, scratch_operands = 0 : i64, tpu.core_type = #tpu.core_type<tc>, window_params = [{transform_indices = @transform_0, window_bounds = array<i64: 8, 256>}, {transform_indices = @transform_1, window_bounds = array<i64: 8, 256>}, {transform_indices = @transform_2, window_bounds = array<i64: 8, 16>}, {transform_indices = @transform_3, window_bounds = array<i64: 8, 16>}, {pipeline_mode = #tpu.pipeline_mode<synchronous>, transform_indices = @transform_4, window_bounds = array<i64: 256, 8>}, {pipeline_mode = #tpu.pipeline_mode<synchronous>, transform_indices = @transform_5, window_bounds = array<i64: 256, 5>}, {pipeline_mode = #tpu.pipeline_mode<synchronous>, transform_indices = @transform_6, window_bounds = array<i64: 256, 5>}, {pipeline_mode = #tpu.pipeline_mode<synchronous>, transform_indices = @transform_7, window_bounds = array<i64: 1, 5>}, {transform_indices = @transform_8, window_bounds = array<i64: 8, 1>}, {transform_indices = @transform_9, window_bounds = array<i64: 8, 5>}]} {
    %c0 = arith.constant 0 : index
    %c0_0 = arith.constant 0 : index
    %0 = vector.load %arg1[%c0, %c0_0] : memref<8x256xf32, #tpu.memory_space<vmem>>, vector<8x256xf32>
    %c0_1 = arith.constant 0 : index
    %c0_2 = arith.constant 0 : index
    %1 = vector.load %arg2[%c0_1, %c0_2] : memref<8x256xf32, #tpu.memory_space<vmem>>, vector<8x256xf32>
    %2 = arith.mulf %0, %1 : vector<8x256xf32>
    %c0_3 = arith.constant 0 : index
    %c0_4 = arith.constant 0 : index
    %3 = vector.load %arg5[%c0_3, %c0_4] : memref<256x8xf32, #tpu.memory_space<vmem>>, vector<256x8xf32>
    %cst = arith.constant dense<0.000000e+00> : vector<8x8xf32>
    %4 = tpu.matmul %2, %3, %cst {dimension_numbers = #tpu.dot_dimension_numbers<[1], [0], [0], [1], [0, 0, 1, 1], [], []>, precision = #tpu.contract_precision<fp32>} : vector<8x256xf32>, vector<256x8xf32>, vector<8x8xf32> -> vector<8x8xf32>
    %c0_5 = arith.constant 0 : index
    %c0_6 = arith.constant 0 : index
    %5 = vector.load %arg3[%c0_5, %c0_6] : memref<8x16xf32, #tpu.memory_space<vmem>>, vector<8x16xf32>
    %c0_7 = arith.constant 0 : index
    %c0_8 = arith.constant 0 : index
    %6 = vector.load %arg4[%c0_7, %c0_8] : memref<8x16xf32, #tpu.memory_space<vmem>>, vector<8x16xf32>
    %7 = arith.addf %5, %6 : vector<8x16xf32>
    %8 = vector.extract_strided_slice %7 {offsets = [0, 0], sizes = [8, 8], strides = [1, 1]} : vector<8x16xf32> to vector<8x8xf32>
    %9 = vector.extract_strided_slice %7 {offsets = [0, 8], sizes = [8, 8], strides = [1, 1]} : vector<8x16xf32> to vector<8x8xf32>
    %10 = arith.addf %4, %8 : vector<8x8xf32>
    %11 = arith.negf %10 : vector<8x8xf32>
    %12 = math.exp %11 : vector<8x8xf32>
    %cst_9 = arith.constant 1.000000e+00 : f32
    %13 = vector.broadcast %cst_9 : f32 to vector<8x8xf32>
    %14 = arith.addf %13, %12 : vector<8x8xf32>
    %15 = arith.divf %13, %14 : vector<8x8xf32>
    %16 = arith.mulf %15, %9 : vector<8x8xf32>
    %cst_10 = arith.constant dense<0.000000e+00> : vector<8xf32>
    %17 = vector.multi_reduction <add>, %16, %cst_10 [1] : vector<8x8xf32> to vector<8xf32>
    %18 = vector.shape_cast %17 : vector<8xf32> to vector<8x1xf32>
    %c0_11 = arith.constant 0 : index
    %c0_12 = arith.constant 0 : index
    %19 = vector.load %arg9[%c0_11, %c0_12] : memref<8x1xf32, #tpu.memory_space<vmem>>, vector<8x1xf32>
    tpu.vector_store %arg9[%c0_11, %c0_12], %18 {strides = array<i32>} : memref<8x1xf32, #tpu.memory_space<vmem>>, vector<8x1xf32>,
    %c0_13 = arith.constant 0 : index
    %c0_14 = arith.constant 0 : index
    %20 = vector.load %arg6[%c0_13, %c0_14] : memref<256x5xf32, #tpu.memory_space<vmem>>, vector<256x5xf32>
    %cst_15 = arith.constant dense<0.000000e+00> : vector<8x5xf32>
    %21 = tpu.matmul %0, %20, %cst_15 {dimension_numbers = #tpu.dot_dimension_numbers<[1], [0], [0], [1], [0, 0, 1, 1], [], []>, precision = #tpu.contract_precision<fp32>} : vector<8x256xf32>, vector<256x5xf32>, vector<8x5xf32> -> vector<8x5xf32>
    %c0_16 = arith.constant 0 : index
    %c0_17 = arith.constant 0 : index
    %22 = vector.load %arg7[%c0_16, %c0_17] : memref<256x5xf32, #tpu.memory_space<vmem>>, vector<256x5xf32>
    %cst_18 = arith.constant dense<0.000000e+00> : vector<8x5xf32>
    %23 = tpu.matmul %1, %22, %cst_18 {dimension_numbers = #tpu.dot_dimension_numbers<[1], [0], [0], [1], [0, 0, 1, 1], [], []>, precision = #tpu.contract_precision<fp32>} : vector<8x256xf32>, vector<256x5xf32>, vector<8x5xf32> -> vector<8x5xf32>
    %24 = arith.addf %21, %23 : vector<8x5xf32>
    %c0_19 = arith.constant 0 : index
    %c0_20 = arith.constant 0 : index
    %25 = vector.load %arg8[%c0_19, %c0_20] : memref<1x5xf32, #tpu.memory_space<vmem>>, vector<1x5xf32>
    %26 = vector.broadcast %25 : vector<1x5xf32> to vector<8x5xf32>
    %27 = arith.addf %24, %26 : vector<8x5xf32>
    %c0_21 = arith.constant 0 : index
    %c0_22 = arith.constant 0 : index
    %28 = vector.load %arg10[%c0_21, %c0_22] : memref<8x5xf32, #tpu.memory_space<vmem>>, vector<8x5xf32>
    tpu.vector_store %arg10[%c0_21, %c0_22], %27 {strides = array<i32>} : memref<8x5xf32, #tpu.memory_space<vmem>>, vector<8x5xf32>,
    return
  }
  func.func @transform_0(%arg0: i32) -> (i32, i32) {
    %c0_i32 = arith.constant 0 : i32
    %c0_i32_0 = arith.constant 0 : i32
    return %arg0, %c0_i32 : i32, i32
  }
  func.func @transform_1(%arg0: i32) -> (i32, i32) {
    %c0_i32 = arith.constant 0 : i32
    %c0_i32_0 = arith.constant 0 : i32
    return %arg0, %c0_i32 : i32, i32
  }
  func.func @transform_2(%arg0: i32) -> (i32, i32) {
    %c0_i32 = arith.constant 0 : i32
    %c0_i32_0 = arith.constant 0 : i32
    return %arg0, %c0_i32 : i32, i32
  }
  func.func @transform_3(%arg0: i32) -> (i32, i32) {
    %c0_i32 = arith.constant 0 : i32
    %c0_i32_0 = arith.constant 0 : i32
    return %arg0, %c0_i32 : i32, i32
  }
  func.func @transform_4(%arg0: i32) -> (i32, i32) {
    %c0_i32 = arith.constant 0 : i32
    %c0_i32_0 = arith.constant 0 : i32
    %c0_i32_1 = arith.constant 0 : i32
    return %c0_i32, %c0_i32_0 : i32, i32
  }
  func.func @transform_5(%arg0: i32) -> (i32, i32) {
    %c0_i32 = arith.constant 0 : i32
    %c0_i32_0 = arith.constant 0 : i32
    %c0_i32_1 = arith.constant 0 : i32
    return %c0_i32, %c0_i32_0 : i32, i32
  }
  func.func @transform_6(%arg0: i32) -> (i32, i32) {
    %c0_i32 = arith.constant 0 : i32
    %c0_i32_0 = arith.constant 0 : i32
    %c0_i32_1 = arith.constant 0 : i32
    return %c0_i32, %c0_i32_0 : i32, i32
  }
  func.func @transform_7(%arg0: i32) -> (i32, i32) {
    %c0_i32 = arith.constant 0 : i32
    %c0_i32_0 = arith.constant 0 : i32
    %c0_i32_1 = arith.constant 0 : i32
    return %c0_i32, %c0_i32_0 : i32, i32
  }
  func.func @transform_8(%arg0: i32) -> (i32, i32) {
    %c0_i32 = arith.constant 0 : i32
    %c0_i32_0 = arith.constant 0 : i32
    return %arg0, %c0_i32 : i32, i32
  }
  func.func @transform_9(%arg0: i32) -> (i32, i32) {
    %c0_i32 = arith.constant 0 : i32
    %c0_i32_0 = arith.constant 0 : i32
    return %arg0, %c0_i32 : i32, i32
  }
}

</mosaic_0001>

<llo_original>
// kernel: tpu_custom_call.1
$region0: #{tpu_custom_call.1}
  #allocation0 [shape = 'u32[]', space=smem, size = 0x4, offset = 0x4, fixed_abs, tag = 'smem constant byte address 0x4 - core index']
  #allocation1 [shape = 'u32[144,128]{1,0:T(1,128)}', space=vmem, size = 0x12000, scoped, tag = 'internal scratch']
  %s0 = inlined_call_operand.vmem [shape: f32[8,256], index: 0, kind: input, shape index: {}]
  %s1 = inlined_call_operand.vmem [shape: f32[8,256], index: 1, kind: input, shape index: {}]
  %s2 = inlined_call_operand.vmem [shape: f32[8,16], index: 2, kind: input, shape index: {}]
  %s3 = inlined_call_operand.vmem [shape: f32[8,16], index: 3, kind: input, shape index: {}]
  %s4 = inlined_call_operand.vmem [shape: f32[256,8], index: 4, kind: input, shape index: {}]
  %s5 = inlined_call_operand.vmem [shape: f32[256,5], index: 5, kind: input, shape index: {}]
  %s6 = inlined_call_operand.vmem [shape: f32[256,5], index: 6, kind: input, shape index: {}]
  %s7 = inlined_call_operand.vmem [shape: f32[1,5], index: 7, kind: input, shape index: {}]
  %s8 = inlined_call_operand.vmem [shape: f32[8,1], index: 8, kind: output, shape index: {0}]
  %s9 = inlined_call_operand.hbm [shape: f32[8,5], index: 9, kind: output, shape index: {1}]
  %10 = xla_tuple %s8, %s9
  %s11 = sld [smem:[#allocation0]]
  $region50: #{tpu_custom_call.1} parent=0
    _
  %s13 = ssub.s32 1, %s11
  %s14 = scalar_select 0, %s13, %s11
  $region1: #{tpu_custom_call.1} parent=0
    #allocation2 [shape = 'u8[4096]{0}', space=vmem, size = 0x1000, scoped, tag = 'output window, operand 1, single buffered']
    #allocation3 [shape = 's32[1]{0}', space=sflag, size = 0x4, scoped, tag = 'scoped memory for tpu_custom_call.1']
    %15 = vsyncpa [#allocation3], 0
    // Predicated region
    $region2: #{tpu_custom_call.1} parent=1 // pred_check
      _
    $region3: #{tpu_custom_call.1} parent=1 // pred_check_branch
      %17 = sbr.rel (0) target = $region5
    $region4: #{tpu_custom_call.1} parent=1 // pred_region
      _
    $region5: #{tpu_custom_call.1} parent=1 // pred_fallthru
      _
    // Predicated region
    $region6: #{tpu_custom_call.1} parent=1 // pred_check
      _
    $region7: #{tpu_custom_call.1} parent=1 // pred_check_branch
      %19 = sbr.rel (0) target = $region9
    $region8: #{tpu_custom_call.1} parent=1 // pred_region
      _
    $region9: #{tpu_custom_call.1} parent=1 // pred_fallthru
      _
    // Predicated region
    $region10: #{tpu_custom_call.1} parent=1 // pred_check
      _
    $region11: #{tpu_custom_call.1} parent=1 // pred_check_branch
      %21 = sbr.rel (0) target = $region13
    $region12: #{tpu_custom_call.1} parent=1 // pred_region
      _
    $region13: #{tpu_custom_call.1} parent=1 // pred_fallthru
      _
    // Predicated region
    $region14: #{tpu_custom_call.1} parent=1 // pred_check
      _
    $region15: #{tpu_custom_call.1} parent=1 // pred_check_branch
      %23 = sbr.rel (0) target = $region17
    $region16: #{tpu_custom_call.1} parent=1 // pred_region
      _
    $region17: #{tpu_custom_call.1} parent=1 // pred_fallthru
      _
    // Predicated region
    $region18: #{tpu_custom_call.1} parent=1 // pred_check
      _
    $region19: #{tpu_custom_call.1} parent=1 // pred_check_branch
      %25 = sbr.rel (0) target = $region21
    $region20: #{tpu_custom_call.1} parent=1 // pred_region
      _
    $region21: #{tpu_custom_call.1} parent=1 // pred_fallthru
      _
    // Predicated region
    $region22: #{tpu_custom_call.1} parent=1 // pred_check
      _
    $region23: #{tpu_custom_call.1} parent=1 // pred_check_branch
      %27 = sbr.rel (0) target = $region25
    $region24: #{tpu_custom_call.1} parent=1 // pred_region
      _
    $region25: #{tpu_custom_call.1} parent=1 // pred_fallthru
      _
    // Predicated region
    $region26: #{tpu_custom_call.1} parent=1 // pred_check
      _
    $region27: #{tpu_custom_call.1} parent=1 // pred_check_branch
      %29 = sbr.rel (0) target = $region29
    $region28: #{tpu_custom_call.1} parent=1 // pred_region
      _
    $region29: #{tpu_custom_call.1} parent=1 // pred_fallthru
      _
    // Predicated region
    $region30: #{tpu_custom_call.1} parent=1 // pred_check
      _
    $region31: #{tpu_custom_call.1} parent=1 // pred_check_branch
      %31 = sbr.rel (0) target = $region33
    $region32: #{tpu_custom_call.1} parent=1 // pred_region
      _
    $region33: #{tpu_custom_call.1} parent=1 // pred_fallthru
      _
    %v32 = vld [vmem:[%s0] sm:$0xff]
    %v33 = vld [vmem:[%s0 + $0x8] sm:$0xff]
    %v34 = vld [vmem:[%s1] sm:$0xff]
    %v35 = vld [vmem:[%s1 + $0x8] sm:$0xff]
    %v36 = vmul.f32 %v32, %v34
    %v37 = vmul.f32 %v33, %v35
    %v38 = vld [vmem:[%s4] sm:$0xff]
    %v39 = vld [vmem:[%s4 + $0x8] sm:$0xff]
    %v40 = vld [vmem:[%s4 + $0x10] sm:$0xff]
    %v41 = vld [vmem:[%s4 + $0x18] sm:$0xff]
    %v42 = vld [vmem:[%s4 + $0x20] sm:$0xff]
    %v43 = vld [vmem:[%s4 + $0x28] sm:$0xff]
    %v44 = vld [vmem:[%s4 + $0x30] sm:$0xff]
    %v45 = vld [vmem:[%s4 + $0x38] sm:$0xff]
    %v46 = vld [vmem:[%s4 + $0x40] sm:$0xff]
    %v47 = vld [vmem:[%s4 + $0x48] sm:$0xff]
    %v48 = vld [vmem:[%s4 + $0x50] sm:$0xff]
    %v49 = vld [vmem:[%s4 + $0x58] sm:$0xff]
    %v50 = vld [vmem:[%s4 + $0x60] sm:$0xff]
    %v51 = vld [vmem:[%s4 + $0x68] sm:$0xff]
    %v52 = vld [vmem:[%s4 + $0x70] sm:$0xff]
    %v53 = vld [vmem:[%s4 + $0x78] sm:$0xff]
    %v54 = vld [vmem:[%s4 + $0x80] sm:$0xff]
    %v55 = vld [vmem:[%s4 + $0x88] sm:$0xff]
    %v56 = vld [vmem:[%s4 + $0x90] sm:$0xff]
    %v57 = vld [vmem:[%s4 + $0x98] sm:$0xff]
    %v58 = vld [vmem:[%s4 + $0xa0] sm:$0xff]
    %v59 = vld [vmem:[%s4 + $0xa8] sm:$0xff]
    %v60 = vld [vmem:[%s4 + $0xb0] sm:$0xff]
    %v61 = vld [vmem:[%s4 + $0xb8] sm:$0xff]
    %v62 = vld [vmem:[%s4 + $0xc0] sm:$0xff]
    %v63 = vld [vmem:[%s4 + $0xc8] sm:$0xff]
    %v64 = vld [vmem:[%s4 + $0xd0] sm:$0xff]
    %v65 = vld [vmem:[%s4 + $0xd8] sm:$0xff]
    %v66 = vld [vmem:[%s4 + $0xe0] sm:$0xff]
    %v67 = vld [vmem:[%s4 + $0xe8] sm:$0xff]
    %v68 = vld [vmem:[%s4 + $0xf0] sm:$0xff]
    %v69 = vld [vmem:[%s4 + $0xf8] sm:$0xff]
    %v70 = vld [vmem:[%s2] sm:$0xff]
    %v71 = vld [vmem:[%s3] sm:$0xff]
    %v72 = vadd.f32 %v70, %v71
    %73 = vmatprep.subr.mxu0 0.0
    %v74 = vand.u32 %v38, 4294901760
    %75 = vmatpush1.msra.mxu0 %v74
    %76 = vmatprep.subr.mxu0 0.0
    %v77 = vand.u32 %v39, 4294901760
    %78 = vmatpush1.msra.mxu0 %v77
    %79 = vmatprep.subr.mxu0 0.0
    %v80 = vand.u32 %v40, 4294901760
    %81 = vmatpush1.msra.mxu0 %v80
    %82 = vmatprep.subr.mxu0 0.0
    %v83 = vand.u32 %v41, 4294901760
    %84 = vmatpush1.msra.mxu0 %v83
    %85 = vmatprep.subr.mxu0 0.0
    %v86 = vand.u32 %v42, 4294901760
    %87 = vmatpush1.msra.mxu0 %v86
    %88 = vmatprep.subr.mxu0 0.0
    %v89 = vand.u32 %v43, 4294901760
    %90 = vmatpush1.msra.mxu0 %v89
    %91 = vmatprep.subr.mxu0 0.0
    %v92 = vand.u32 %v44, 4294901760
    %93 = vmatpush1.msra.mxu0 %v92
    %94 = vmatprep.subr.mxu0 0.0
    %v95 = vand.u32 %v45, 4294901760
    %96 = vmatpush1.msra.mxu0 %v95
    %97 = vmatprep.subr.mxu0 0.0
    %v98 = vand.u32 %v46, 4294901760
    %99 = vmatpush1.msra.mxu0 %v98
    %100 = vmatprep.subr.mxu0 0.0
    %v101 = vand.u32 %v47, 4294901760
    %102 = vmatpush1.msra.mxu0 %v101
    %103 = vmatprep.subr.mxu0 0.0
    %v104 = vand.u32 %v48, 4294901760
    %105 = vmatpush1.msra.mxu0 %v104
    %106 = vmatprep.subr.mxu0 0.0
    %v107 = vand.u32 %v49, 4294901760
    %108 = vmatpush1.msra.mxu0 %v107
    %109 = vmatprep.subr.mxu0 0.0
    %v110 = vand.u32 %v50, 4294901760
    %111 = vmatpush1.msra.mxu0 %v110
    %112 = vmatprep.subr.mxu0 0.0
    %v113 = vand.u32 %v51, 4294901760
    %114 = vmatpush1.msra.mxu0 %v113
    %115 = vmatprep.subr.mxu0 0.0
    %v116 = vand.u32 %v52, 4294901760
    %117 = vmatpush1.msra.mxu0 %v116
    %118 = vmatprep.subr.mxu0 0.0
    %v119 = vand.u32 %v53, 4294901760
    %120 = vmatpush1.msra.mxu0 %v119
    %121 = vmatprep.subr.mxu0 0.0
    %v122 = vand.u32 %v54, 4294901760
    %123 = vmatpush1.msra.mxu0 %v122
    %124 = vmatprep.subr.mxu0 0.0
    %v125 = vand.u32 %v55, 4294901760
    %126 = vmatpush1.msra.mxu0 %v125
    %127 = vmatprep.subr.mxu0 0.0
    %v128 = vand.u32 %v56, 4294901760
    %129 = vmatpush1.msra.mxu0 %v128
    %130 = vmatprep.subr.mxu0 0.0
    %v131 = vand.u32 %v57, 4294901760
    %132 = vmatpush1.msra.mxu0 %v131
    %133 = vmatprep.subr.mxu0 0.0
    %v134 = vand.u32 %v58, 4294901760
    %135 = vmatpush1.msra.mxu0 %v134
    %136 = vmatprep.subr.mxu0 0.0
    %v137 = vand.u32 %v59, 4294901760
    %138 = vmatpush1.msra.mxu0 %v137
    %139 = vmatprep.subr.mxu0 0.0
    %v140 = vand.u32 %v60, 4294901760
    %141 = vmatpush1.msra.mxu0 %v140
    %142 = vmatprep.subr.mxu0 0.0
    %v143 = vand.u32 %v61, 4294901760
    %144 = vmatpush1.msra.mxu0 %v143
    %145 = vmatprep.subr.mxu0 0.0
    %v146 = vand.u32 %v62, 4294901760
    %147 = vmatpush1.msra.mxu0 %v146
    %148 = vmatprep.subr.mxu0 0.0
    %v149 = vand.u32 %v63, 4294901760
    %150 = vmatpush1.msra.mxu0 %v149
    %151 = vmatprep.subr.mxu0 0.0
    %v152 = vand.u32 %v64, 4294901760
    %153 = vmatpush1.msra.mxu0 %v152
    %154 = vmatprep.subr.mxu0 0.0
    %v155 = vand.u32 %v65, 4294901760
    %156 = vmatpush1.msra.mxu0 %v155
    %157 = vmatprep.subr.mxu0 0.0
    %v158 = vand.u32 %v66, 4294901760
    %159 = vmatpush1.msra.mxu0 %v158
    %160 = vmatprep.subr.mxu0 0.0
    %v161 = vand.u32 %v67, 4294901760
    %162 = vmatpush1.msra.mxu0 %v161
    %163 = vmatprep.subr.mxu0 0.0
    %v164 = vand.u32 %v68, 4294901760
    %165 = vmatpush1.msra.mxu0 %v164
    %166 = vmatprep.subr.mxu0 0.0
    %v167 = vand.u32 %v69, 4294901760
    %168 = vmatpush1.msra.mxu0 %v167
    %v169 = vand.u32 %v37, 4294901760
    %v170 = vsub.f32 %v37, %v169
    %v171 = vand.u32 %v170, 4294901760
    %v172 = vsub.f32 %v170, %v171
    %v173 = vand.u32 %v172, 4294901760
    %174 = vmatprep.mubr.f32.mxu0 %v173
    %v175 = vand.u32 %v36, 4294901760
    %v176 = vsub.f32 %v36, %v175
    %v177 = vand.u32 %v176, 4294901760
    %v178 = vsub.f32 %v176, %v177
    %v179 = vand.u32 %v178, 4294901760
    %180 = vmatmul.mubr.f32.gmra.mrb[0].mxu0 %v179
    %v181 = vpop.f32.mrb[0].mxu0
    %v182 = vadd.f32 %v72, %v181
    %v183 = vpop.f32.mrb[0].mxu0
    %184 = vdwg.mxu0
    %185 = vmatprep.subr.mxu0 0.0
    %v186 = vand.u32 %v38, 4294901760
    %v187 = vsub.f32 %v38, %v186
    %v188 = vand.u32 %v187, 4294901760
    %v189 = vsub.f32 %v187, %v188
    %v190 = vand.u32 %v189, 4294901760
    %191 = vmatpush1.msra.mxu0 %v190
    %192 = vmatprep.subr.mxu0 0.0
    %v193 = vand.u32 %v39, 4294901760
    %v194 = vsub.f32 %v39, %v193
    %v195 = vand.u32 %v194, 4294901760
    %v196 = vsub.f32 %v194, %v195
    %v197 = vand.u32 %v196, 4294901760
    %198 = vmatpush1.msra.mxu0 %v197
    %199 = vmatprep.subr.mxu0 0.0
    %v200 = vand.u32 %v40, 4294901760
    %v201 = vsub.f32 %v40, %v200
    %v202 = vand.u32 %v201, 4294901760
    %v203 = vsub.f32 %v201, %v202
    %v204 = vand.u32 %v203, 4294901760
    %205 = vmatpush1.msra.mxu0 %v204
    %206 = vmatprep.subr.mxu0 0.0
    %v207 = vand.u32 %v41, 4294901760
    %v208 = vsub.f32 %v41, %v207
    %v209 = vand.u32 %v208, 4294901760
    %v210 = vsub.f32 %v208, %v209
    %v211 = vand.u32 %v210, 4294901760
    %212 = vmatpush1.msra.mxu0 %v211
    %213 = vmatprep.subr.mxu0 0.0
    %v214 = vand.u32 %v42, 4294901760
    %v215 = vsub.f32 %v42, %v214
    %v216 = vand.u32 %v215, 4294901760
    %v217 = vsub.f32 %v215, %v216
    %v218 = vand.u32 %v217, 4294901760
    %219 = vmatpush1.msra.mxu0 %v218
    %220 = vmatprep.subr.mxu0 0.0
    %v221 = vand.u32 %v43, 4294901760
    %v222 = vsub.f32 %v43, %v221
    %v223 = vand.u32 %v222, 4294901760
    %v224 = vsub.f32 %v222, %v223
    %v225 = vand.u32 %v224, 4294901760
    %226 = vmatpush1.msra.mxu0 %v225
    %227 = vmatprep.subr.mxu0 0.0
    %v228 = vand.u32 %v44, 4294901760
    %v229 = vsub.f32 %v44, %v228
    %v230 = vand.u32 %v229, 4294901760
    %v231 = vsub.f32 %v229, %v230
    %v232 = vand.u32 %v231, 4294901760
    %233 = vmatpush1.msra.mxu0 %v232
    %234 = vmatprep.subr.mxu0 0.0
    %v235 = vand.u32 %v45, 4294901760
    %v236 = vsub.f32 %v45, %v235
    %v237 = vand.u32 %v236, 4294901760
    %v238 = vsub.f32 %v236, %v237
    %v239 = vand.u32 %v238, 4294901760
    %240 = vmatpush1.msra.mxu0 %v239
    %241 = vmatprep.subr.mxu0 0.0
    %v242 = vand.u32 %v46, 4294901760
    %v243 = vsub.f32 %v46, %v242
    %v244 = vand.u32 %v243, 4294901760
    %v245 = vsub.f32 %v243, %v244
    %v246 = vand.u32 %v245, 4294901760
    %247 = vmatpush1.msra.mxu0 %v246
    %248 = vmatprep.subr.mxu0 0.0
    %v249 = vand.u32 %v47, 4294901760
    %v250 = vsub.f32 %v47, %v249
    %v251 = vand.u32 %v250, 4294901760
    %v252 = vsub.f32 %v250, %v251
    %v253 = vand.u32 %v252, 4294901760
    %254 = vmatpush1.msra.mxu0 %v253
    %255 = vmatprep.subr.mxu0 0.0
    %v256 = vand.u32 %v48, 4294901760
    %v257 = vsub.f32 %v48, %v256
    %v258 = vand.u32 %v257, 4294901760
    %v259 = vsub.f32 %v257, %v258
    %v260 = vand.u32 %v259, 4294901760
    %261 = vmatpush1.msra.mxu0 %v260
    %262 = vmatprep.subr.mxu0 0.0
    %v263 = vand.u32 %v49, 4294901760
    %v264 = vsub.f32 %v49, %v263
    %v265 = vand.u32 %v264, 4294901760
    %v266 = vsub.f32 %v264, %v265
    %v267 = vand.u32 %v266, 4294901760
    %268 = vmatpush1.msra.mxu0 %v267
    %269 = vmatprep.subr.mxu0 0.0
    %v270 = vand.u32 %v50, 4294901760
    %v271 = vsub.f32 %v50, %v270
    %v272 = vand.u32 %v271, 4294901760
    %v273 = vsub.f32 %v271, %v272
    %v274 = vand.u32 %v273, 4294901760
    %275 = vmatpush1.msra.mxu0 %v274
    %276 = vmatprep.subr.mxu0 0.0
    %v277 = vand.u32 %v51, 4294901760
    %v278 = vsub.f32 %v51, %v277
    %v279 = vand.u32 %v278, 4294901760
    %v280 = vsub.f32 %v278, %v279
    %v281 = vand.u32 %v280, 4294901760
    %282 = vmatpush1.msra.mxu0 %v281
    %283 = vmatprep.subr.mxu0 0.0
    %v284 = vand.u32 %v52, 4294901760
    %v285 = vsub.f32 %v52, %v284
    %v286 = vand.u32 %v285, 4294901760
    %v287 = vsub.f32 %v285, %v286
    %v288 = vand.u32 %v287, 4294901760
    %289 = vmatpush1.msra.mxu0 %v288
    %290 = vmatprep.subr.mxu0 0.0
    %v291 = vand.u32 %v53, 4294901760
    %v292 = vsub.f32 %v53, %v291
    %v293 = vand.u32 %v292, 4294901760
    %v294 = vsub.f32 %v292, %v293
    %v295 = vand.u32 %v294, 4294901760
    %296 = vmatpush1.msra.mxu0 %v295
    %297 = vmatprep.subr.mxu0 0.0
    %v298 = vand.u32 %v54, 4294901760
    %v299 = vsub.f32 %v54, %v298
    %v300 = vand.u32 %v299, 4294901760
    %v301 = vsub.f32 %v299, %v300
    %v302 = vand.u32 %v301, 4294901760
    %303 = vmatpush1.msra.mxu0 %v302
    %304 = vmatprep.subr.mxu0 0.0
    %v305 = vand.u32 %v55, 4294901760
    %v306 = vsub.f32 %v55, %v305
    %v307 = vand.u32 %v306, 4294901760
    %v308 = vsub.f32 %v306, %v307
    %v309 = vand.u32 %v308, 4294901760
    %310 = vmatpush1.msra.mxu0 %v309
    %311 = vmatprep.subr.mxu0 0.0
    %v312 = vand.u32 %v56, 4294901760
    %v313 = vsub.f32 %v56, %v312
    %v314 = vand.u32 %v313, 4294901760
    %v315 = vsub.f32 %v313, %v314
    %v316 = vand.u32 %v315, 4294901760
    %317 = vmatpush1.msra.mxu0 %v316
    %318 = vmatprep.subr.mxu0 0.0
    %v319 = vand.u32 %v57, 4294901760
    %v320 = vsub.f32 %v57, %v319
    %v321 = vand.u32 %v320, 4294901760
    %v322 = vsub.f32 %v320, %v321
    %v323 = vand.u32 %v322, 4294901760
    %324 = vmatpush1.msra.mxu0 %v323
    %325 = vmatprep.subr.mxu0 0.0
    %v326 = vand.u32 %v58, 4294901760
    %v327 = vsub.f32 %v58, %v326
    %v328 = vand.u32 %v327, 4294901760
    %v329 = vsub.f32 %v327, %v328
    %v330 = vand.u32 %v329, 4294901760
    %331 = vmatpush1.msra.mxu0 %v330
    %332 = vmatprep.subr.mxu0 0.0
    %v333 = vand.u32 %v59, 4294901760
    %v334 = vsub.f32 %v59, %v333
    %v335 = vand.u32 %v334, 4294901760
    %v336 = vsub.f32 %v334, %v335
    %v337 = vand.u32 %v336, 4294901760
    %338 = vmatpush1.msra.mxu0 %v337
    %339 = vmatprep.subr.mxu0 0.0
    %v340 = vand.u32 %v60, 4294901760
    %v341 = vsub.f32 %v60, %v340
    %v342 = vand.u32 %v341, 4294901760
    %v343 = vsub.f32 %v341, %v342
    %v344 = vand.u32 %v343, 4294901760
    %345 = vmatpush1.msra.mxu0 %v344
    %346 = vmatprep.subr.mxu0 0.0
    %v347 = vand.u32 %v61, 4294901760
    %v348 = vsub.f32 %v61, %v347
    %v349 = vand.u32 %v348, 4294901760
    %v350 = vsub.f32 %v348, %v349
    %v351 = vand.u32 %v350, 4294901760
    %352 = vmatpush1.msra.mxu0 %v351
    %353 = vmatprep.subr.mxu0 0.0
    %v354 = vand.u32 %v62, 4294901760
    %v355 = vsub.f32 %v62, %v354
    %v356 = vand.u32 %v355, 4294901760
    %v357 = vsub.f32 %v355, %v356
    %v358 = vand.u32 %v357, 4294901760
    %359 = vmatpush1.msra.mxu0 %v358
    %360 = vmatprep.subr.mxu0 0.0
    %v361 = vand.u32 %v63, 4294901760
    %v362 = vsub.f32 %v63, %v361
    %v363 = vand.u32 %v362, 4294901760
    %v364 = vsub.f32 %v362, %v363
    %v365 = vand.u32 %v364, 4294901760
    %366 = vmatpush1.msra.mxu0 %v365
    %367 = vmatprep.subr.mxu0 0.0
    %v368 = vand.u32 %v64, 4294901760
    %v369 = vsub.f32 %v64, %v368
    %v370 = vand.u32 %v369, 4294901760
    %v371 = vsub.f32 %v369, %v370
    %v372 = vand.u32 %v371, 4294901760
    %373 = vmatpush1.msra.mxu0 %v372
    %374 = vmatprep.subr.mxu0 0.0
    %v375 = vand.u32 %v65, 4294901760
    %v376 = vsub.f32 %v65, %v375
    %v377 = vand.u32 %v376, 4294901760
    %v378 = vsub.f32 %v376, %v377
    %v379 = vand.u32 %v378, 4294901760
    %380 = vmatpush1.msra.mxu0 %v379
    %381 = vmatprep.subr.mxu0 0.0
    %v382 = vand.u32 %v66, 4294901760
    %v383 = vsub.f32 %v66, %v382
    %v384 = vand.u32 %v383, 4294901760
    %v385 = vsub.f32 %v383, %v384
    %v386 = vand.u32 %v385, 4294901760
    %387 = vmatpush1.msra.mxu0 %v386
    %388 = vmatprep.subr.mxu0 0.0
    %v389 = vand.u32 %v67, 4294901760
    %v390 = vsub.f32 %v67, %v389
    %v391 = vand.u32 %v390, 4294901760
    %v392 = vsub.f32 %v390, %v391
    %v393 = vand.u32 %v392, 4294901760
    %394 = vmatpush1.msra.mxu0 %v393
    %395 = vmatprep.subr.mxu0 0.0
    %v396 = vand.u32 %v68, 4294901760
    %v397 = vsub.f32 %v68, %v396
    %v398 = vand.u32 %v397, 4294901760
    %v399 = vsub.f32 %v397, %v398
    %v400 = vand.u32 %v399, 4294901760
    %401 = vmatpush1.msra.mxu0 %v400
    %402 = vmatprep.subr.mxu0 0.0
    %v403 = vand.u32 %v69, 4294901760
    %v404 = vsub.f32 %v69, %v403
    %v405 = vand.u32 %v404, 4294901760
    %v406 = vsub.f32 %v404, %v405
    %v407 = vand.u32 %v406, 4294901760
    %408 = vmatpush1.msra.mxu0 %v407
    %v409 = vand.u32 %v37, 4294901760
    %410 = vmatprep.mubr.f32.mxu0 %v409
    %v411 = vand.u32 %v36, 4294901760
    %412 = vmatmul.mubr.f32.gmra.mrb[0].mxu0 %v411
    %v413 = vpop.f32.mrb[0].mxu0
    %v414 = vadd.f32 %v182, %v413
    %v415 = vpop.f32.mrb[0].mxu0
    %416 = vdwg.mxu0
    %417 = vmatprep.subr.mxu0 0.0
    %v418 = vand.u32 %v38, 4294901760
    %v419 = vsub.f32 %v38, %v418
    %420 = vmatpush1.msra.mxu0 %v419
    %421 = vmatprep.subr.mxu0 0.0
    %v422 = vand.u32 %v39, 4294901760
    %v423 = vsub.f32 %v39, %v422
    %424 = vmatpush1.msra.mxu0 %v423
    %425 = vmatprep.subr.mxu0 0.0
    %v426 = vand.u32 %v40, 4294901760
    %v427 = vsub.f32 %v40, %v426
    %428 = vmatpush1.msra.mxu0 %v427
    %429 = vmatprep.subr.mxu0 0.0
    %v430 = vand.u32 %v41, 4294901760
    %v431 = vsub.f32 %v41, %v430
    %432 = vmatpush1.msra.mxu0 %v431
    %433 = vmatprep.subr.mxu0 0.0
    %v434 = vand.u32 %v42, 4294901760
    %v435 = vsub.f32 %v42, %v434
    %436 = vmatpush1.msra.mxu0 %v435
    %437 = vmatprep.subr.mxu0 0.0
    %v438 = vand.u32 %v43, 4294901760
    %v439 = vsub.f32 %v43, %v438
    %440 = vmatpush1.msra.mxu0 %v439
    %441 = vmatprep.subr.mxu0 0.0
    %v442 = vand.u32 %v44, 4294901760
    %v443 = vsub.f32 %v44, %v442
    %444 = vmatpush1.msra.mxu0 %v443
    %445 = vmatprep.subr.mxu0 0.0
    %v446 = vand.u32 %v45, 4294901760
    %v447 = vsub.f32 %v45, %v446
    %448 = vmatpush1.msra.mxu0 %v447
    %449 = vmatprep.subr.mxu0 0.0
    %v450 = vand.u32 %v46, 4294901760
    %v451 = vsub.f32 %v46, %v450
    %452 = vmatpush1.msra.mxu0 %v451
    %453 = vmatprep.subr.mxu0 0.0
    %v454 = vand.u32 %v47, 4294901760
    %v455 = vsub.f32 %v47, %v454
    %456 = vmatpush1.msra.mxu0 %v455
    %457 = vmatprep.subr.mxu0 0.0
    %v458 = vand.u32 %v48, 4294901760
    %v459 = vsub.f32 %v48, %v458
    %460 = vmatpush1.msra.mxu0 %v459
    %461 = vmatprep.subr.mxu0 0.0
    %v462 = vand.u32 %v49, 4294901760
    %v463 = vsub.f32 %v49, %v462
    %464 = vmatpush1.msra.mxu0 %v463
    %465 = vmatprep.subr.mxu0 0.0
    %v466 = vand.u32 %v50, 4294901760
    %v467 = vsub.f32 %v50, %v466
    %468 = vmatpush1.msra.mxu0 %v467
    %469 = vmatprep.subr.mxu0 0.0
    %v470 = vand.u32 %v51, 4294901760
    %v471 = vsub.f32 %v51, %v470
    %472 = vmatpush1.msra.mxu0 %v471
    %473 = vmatprep.subr.mxu0 0.0
    %v474 = vand.u32 %v52, 4294901760
    %v475 = vsub.f32 %v52, %v474
    %476 = vmatpush1.msra.mxu0 %v475
    %477 = vmatprep.subr.mxu0 0.0
    %v478 = vand.u32 %v53, 4294901760
    %v479 = vsub.f32 %v53, %v478
    %480 = vmatpush1.msra.mxu0 %v479
    %481 = vmatprep.subr.mxu0 0.0
    %v482 = vand.u32 %v54, 4294901760
    %v483 = vsub.f32 %v54, %v482
    %484 = vmatpush1.msra.mxu0 %v483
    %485 = vmatprep.subr.mxu0 0.0
    %v486 = vand.u32 %v55, 4294901760
    %v487 = vsub.f32 %v55, %v486
    %488 = vmatpush1.msra.mxu0 %v487
    %489 = vmatprep.subr.mxu0 0.0
    %v490 = vand.u32 %v56, 4294901760
    %v491 = vsub.f32 %v56, %v490
    %492 = vmatpush1.msra.mxu0 %v491
    %493 = vmatprep.subr.mxu0 0.0
    %v494 = vand.u32 %v57, 4294901760
    %v495 = vsub.f32 %v57, %v494
    %496 = vmatpush1.msra.mxu0 %v495
    %497 = vmatprep.subr.mxu0 0.0
    %v498 = vand.u32 %v58, 4294901760
    %v499 = vsub.f32 %v58, %v498
    %500 = vmatpush1.msra.mxu0 %v499
    %501 = vmatprep.subr.mxu0 0.0
    %v502 = vand.u32 %v59, 4294901760
    %v503 = vsub.f32 %v59, %v502
    %504 = vmatpush1.msra.mxu0 %v503
    %505 = vmatprep.subr.mxu0 0.0
    %v506 = vand.u32 %v60, 4294901760
    %v507 = vsub.f32 %v60, %v506
    %508 = vmatpush1.msra.mxu0 %v507
    %509 = vmatprep.subr.mxu0 0.0
    %v510 = vand.u32 %v61, 4294901760
    %v511 = vsub.f32 %v61, %v510
    %512 = vmatpush1.msra.mxu0 %v511
    %513 = vmatprep.subr.mxu0 0.0
    %v514 = vand.u32 %v62, 4294901760
    %v515 = vsub.f32 %v62, %v514
    %516 = vmatpush1.msra.mxu0 %v515
    %517 = vmatprep.subr.mxu0 0.0
    %v518 = vand.u32 %v63, 4294901760
    %v519 = vsub.f32 %v63, %v518
    %520 = vmatpush1.msra.mxu0 %v519
    %521 = vmatprep.subr.mxu0 0.0
    %v522 = vand.u32 %v64, 4294901760
    %v523 = vsub.f32 %v64, %v522
    %524 = vmatpush1.msra.mxu0 %v523
    %525 = vmatprep.subr.mxu0 0.0
    %v526 = vand.u32 %v65, 4294901760
    %v527 = vsub.f32 %v65, %v526
    %528 = vmatpush1.msra.mxu0 %v527
    %529 = vmatprep.subr.mxu0 0.0
    %v530 = vand.u32 %v66, 4294901760
    %v531 = vsub.f32 %v66, %v530
    %532 = vmatpush1.msra.mxu0 %v531
    %533 = vmatprep.subr.mxu0 0.0
    %v534 = vand.u32 %v67, 4294901760
    %v535 = vsub.f32 %v67, %v534
    %536 = vmatpush1.msra.mxu0 %v535
    %537 = vmatprep.subr.mxu0 0.0
    %v538 = vand.u32 %v68, 4294901760
    %v539 = vsub.f32 %v68, %v538
    %540 = vmatpush1.msra.mxu0 %v539
    %541 = vmatprep.subr.mxu0 0.0
    %v542 = vand.u32 %v69, 4294901760
    %v543 = vsub.f32 %v69, %v542
    %544 = vmatpush1.msra.mxu0 %v543
    %v545 = vand.u32 %v37, 4294901760
    %v546 = vsub.f32 %v37, %v545
    %547 = vmatprep.mubr.f32.mxu0 %v546
    %v548 = vand.u32 %v36, 4294901760
    %v549 = vsub.f32 %v36, %v548
    %550 = vmatmul.mubr.f32.gmra.mrb[0].mxu0 %v549
    %v551 = vpop.f32.mrb[0].mxu0
    %v552 = vadd.f32 %v414, %v551
    %v553 = vpop.f32.mrb[0].mxu0
    %554 = vdwg.mxu0
    %555 = vmatprep.subr.mxu0 0.0
    %v556 = vand.u32 %v38, 4294901760
    %557 = vmatpush1.msra.mxu0 %v556
    %558 = vmatprep.subr.mxu0 0.0
    %v559 = vand.u32 %v39, 4294901760
    %560 = vmatpush1.msra.mxu0 %v559
    %561 = vmatprep.subr.mxu0 0.0
    %v562 = vand.u32 %v40, 4294901760
    %563 = vmatpush1.msra.mxu0 %v562
    %564 = vmatprep.subr.mxu0 0.0
    %v565 = vand.u32 %v41, 4294901760
    %566 = vmatpush1.msra.mxu0 %v565
    %567 = vmatprep.subr.mxu0 0.0
    %v568 = vand.u32 %v42, 4294901760
    %569 = vmatpush1.msra.mxu0 %v568
    %570 = vmatprep.subr.mxu0 0.0
    %v571 = vand.u32 %v43, 4294901760
    %572 = vmatpush1.msra.mxu0 %v571
    %573 = vmatprep.subr.mxu0 0.0
    %v574 = vand.u32 %v44, 4294901760
    %575 = vmatpush1.msra.mxu0 %v574
    %576 = vmatprep.subr.mxu0 0.0
    %v577 = vand.u32 %v45, 4294901760
    %578 = vmatpush1.msra.mxu0 %v577
    %579 = vmatprep.subr.mxu0 0.0
    %v580 = vand.u32 %v46, 4294901760
    %581 = vmatpush1.msra.mxu0 %v580
    %582 = vmatprep.subr.mxu0 0.0
    %v583 = vand.u32 %v47, 4294901760
    %584 = vmatpush1.msra.mxu0 %v583
    %585 = vmatprep.subr.mxu0 0.0
    %v586 = vand.u32 %v48, 4294901760
    %587 = vmatpush1.msra.mxu0 %v586
    %588 = vmatprep.subr.mxu0 0.0
    %v589 = vand.u32 %v49, 4294901760
    %590 = vmatpush1.msra.mxu0 %v589
    %591 = vmatprep.subr.mxu0 0.0
    %v592 = vand.u32 %v50, 4294901760
    %593 = vmatpush1.msra.mxu0 %v592
    %594 = vmatprep.subr.mxu0 0.0
    %v595 = vand.u32 %v51, 4294901760
    %596 = vmatpush1.msra.mxu0 %v595
    %597 = vmatprep.subr.mxu0 0.0
    %v598 = vand.u32 %v52, 4294901760
    %599 = vmatpush1.msra.mxu0 %v598
    %600 = vmatprep.subr.mxu0 0.0
    %v601 = vand.u32 %v53, 4294901760
    %602 = vmatpush1.msra.mxu0 %v601
    %603 = vmatprep.subr.mxu0 0.0
    %v604 = vand.u32 %v54, 4294901760
    %605 = vmatpush1.msra.mxu0 %v604
    %606 = vmatprep.subr.mxu0 0.0
    %v607 = vand.u32 %v55, 4294901760
    %608 = vmatpush1.msra.mxu0 %v607
    %609 = vmatprep.subr.mxu0 0.0
    %v610 = vand.u32 %v56, 4294901760
    %611 = vmatpush1.msra.mxu0 %v610
    %612 = vmatprep.subr.mxu0 0.0
    %v613 = vand.u32 %v57, 4294901760
    %614 = vmatpush1.msra.mxu0 %v613
    %615 = vmatprep.subr.mxu0 0.0
    %v616 = vand.u32 %v58, 4294901760
    %617 = vmatpush1.msra.mxu0 %v616
    %618 = vmatprep.subr.mxu0 0.0
    %v619 = vand.u32 %v59, 4294901760
    %620 = vmatpush1.msra.mxu0 %v619
    %621 = vmatprep.subr.mxu0 0.0
    %v622 = vand.u32 %v60, 4294901760
    %623 = vmatpush1.msra.mxu0 %v622
    %624 = vmatprep.subr.mxu0 0.0
    %v625 = vand.u32 %v61, 4294901760
    %626 = vmatpush1.msra.mxu0 %v625
    %627 = vmatprep.subr.mxu0 0.0
    %v628 = vand.u32 %v62, 4294901760
    %629 = vmatpush1.msra.mxu0 %v628
    %630 = vmatprep.subr.mxu0 0.0
    %v631 = vand.u32 %v63, 4294901760
    %632 = vmatpush1.msra.mxu0 %v631
    %633 = vmatprep.subr.mxu0 0.0
    %v634 = vand.u32 %v64, 4294901760
    %635 = vmatpush1.msra.mxu0 %v634
    %636 = vmatprep.subr.mxu0 0.0
    %v637 = vand.u32 %v65, 4294901760
    %638 = vmatpush1.msra.mxu0 %v637
    %639 = vmatprep.subr.mxu0 0.0
    %v640 = vand.u32 %v66, 4294901760
    %641 = vmatpush1.msra.mxu0 %v640
    %642 = vmatprep.subr.mxu0 0.0
    %v643 = vand.u32 %v67, 4294901760
    %644 = vmatpush1.msra.mxu0 %v643
    %645 = vmatprep.subr.mxu0 0.0
    %v646 = vand.u32 %v68, 4294901760
    %647 = vmatpush1.msra.mxu0 %v646
    %648 = vmatprep.subr.mxu0 0.0
    %v649 = vand.u32 %v69, 4294901760
    %650 = vmatpush1.msra.mxu0 %v649
    %v651 = vand.u32 %v37, 4294901760
    %v652 = vsub.f32 %v37, %v651
    %v653 = vand.u32 %v652, 4294901760
    %654 = vmatprep.mubr.f32.mxu0 %v653
    %v655 = vand.u32 %v36, 4294901760
    %v656 = vsub.f32 %v36, %v655
    %v657 = vand.u32 %v656, 4294901760
    %658 = vmatmul.mubr.f32.gmra.mrb[0].mxu0 %v657
    %v659 = vpop.f32.mrb[0].mxu0
    %v660 = vadd.f32 %v552, %v659
    %v661 = vpop.f32.mrb[0].mxu0
    %662 = vdwg.mxu0
    %663 = vmatprep.subr.mxu0 0.0
    %v664 = vand.u32 %v38, 4294901760
    %v665 = vsub.f32 %v38, %v664
    %v666 = vand.u32 %v665, 4294901760
    %667 = vmatpush1.msra.mxu0 %v666
    %668 = vmatprep.subr.mxu0 0.0
    %v669 = vand.u32 %v39, 4294901760
    %v670 = vsub.f32 %v39, %v669
    %v671 = vand.u32 %v670, 4294901760
    %672 = vmatpush1.msra.mxu0 %v671
    %673 = vmatprep.subr.mxu0 0.0
    %v674 = vand.u32 %v40, 4294901760
    %v675 = vsub.f32 %v40, %v674
    %v676 = vand.u32 %v675, 4294901760
    %677 = vmatpush1.msra.mxu0 %v676
    %678 = vmatprep.subr.mxu0 0.0
    %v679 = vand.u32 %v41, 4294901760
    %v680 = vsub.f32 %v41, %v679
    %v681 = vand.u32 %v680, 4294901760
    %682 = vmatpush1.msra.mxu0 %v681
    %683 = vmatprep.subr.mxu0 0.0
    %v684 = vand.u32 %v42, 4294901760
    %v685 = vsub.f32 %v42, %v684
    %v686 = vand.u32 %v685, 4294901760
    %687 = vmatpush1.msra.mxu0 %v686
    %688 = vmatprep.subr.mxu0 0.0
    %v689 = vand.u32 %v43, 4294901760
    %v690 = vsub.f32 %v43, %v689
    %v691 = vand.u32 %v690, 4294901760
    %692 = vmatpush1.msra.mxu0 %v691
    %693 = vmatprep.subr.mxu0 0.0
    %v694 = vand.u32 %v44, 4294901760
    %v695 = vsub.f32 %v44, %v694
    %v696 = vand.u32 %v695, 4294901760
    %697 = vmatpush1.msra.mxu0 %v696
    %698 = vmatprep.subr.mxu0 0.0
    %v699 = vand.u32 %v45, 4294901760
    %v700 = vsub.f32 %v45, %v699
    %v701 = vand.u32 %v700, 4294901760
    %702 = vmatpush1.msra.mxu0 %v701
    %703 = vmatprep.subr.mxu0 0.0
    %v704 = vand.u32 %v46, 4294901760
    %v705 = vsub.f32 %v46, %v704
    %v706 = vand.u32 %v705, 4294901760
    %707 = vmatpush1.msra.mxu0 %v706
    %708 = vmatprep.subr.mxu0 0.0
    %v709 = vand.u32 %v47, 4294901760
    %v710 = vsub.f32 %v47, %v709
    %v711 = vand.u32 %v710, 4294901760
    %712 = vmatpush1.msra.mxu0 %v711
    %713 = vmatprep.subr.mxu0 0.0
    %v714 = vand.u32 %v48, 4294901760
    %v715 = vsub.f32 %v48, %v714
    %v716 = vand.u32 %v715, 4294901760
    %717 = vmatpush1.msra.mxu0 %v716
    %718 = vmatprep.subr.mxu0 0.0
    %v719 = vand.u32 %v49, 4294901760
    %v720 = vsub.f32 %v49, %v719
    %v721 = vand.u32 %v720, 4294901760
    %722 = vmatpush1.msra.mxu0 %v721
    %723 = vmatprep.subr.mxu0 0.0
    %v724 = vand.u32 %v50, 4294901760
    %v725 = vsub.f32 %v50, %v724
    %v726 = vand.u32 %v725, 4294901760
    %727 = vmatpush1.msra.mxu0 %v726
    %728 = vmatprep.subr.mxu0 0.0
    %v729 = vand.u32 %v51, 4294901760
    %v730 = vsub.f32 %v51, %v729
    %v731 = vand.u32 %v730, 4294901760
    %732 = vmatpush1.msra.mxu0 %v731
    %733 = vmatprep.subr.mxu0 0.0
    %v734 = vand.u32 %v52, 4294901760
    %v735 = vsub.f32 %v52, %v734
    %v736 = vand.u32 %v735, 4294901760
    %737 = vmatpush1.msra.mxu0 %v736
    %738 = vmatprep.subr.mxu0 0.0
    %v739 = vand.u32 %v53, 4294901760
    %v740 = vsub.f32 %v53, %v739
    %v741 = vand.u32 %v740, 4294901760
    %742 = vmatpush1.msra.mxu0 %v741
    %743 = vmatprep.subr.mxu0 0.0
    %v744 = vand.u32 %v54, 4294901760
    %v745 = vsub.f32 %v54, %v744
    %v746 = vand.u32 %v745, 4294901760
    %747 = vmatpush1.msra.mxu0 %v746
    %748 = vmatprep.subr.mxu0 0.0
    %v749 = vand.u32 %v55, 4294901760
    %v750 = vsub.f32 %v55, %v749
    %v751 = vand.u32 %v750, 4294901760
    %752 = vmatpush1.msra.mxu0 %v751
    %753 = vmatprep.subr.mxu0 0.0
    %v754 = vand.u32 %v56, 4294901760
    %v755 = vsub.f32 %v56, %v754
    %v756 = vand.u32 %v755, 4294901760
    %757 = vmatpush1.msra.mxu0 %v756
    %758 = vmatprep.subr.mxu0 0.0
    %v759 = vand.u32 %v57, 4294901760
    %v760 = vsub.f32 %v57, %v759
    %v761 = vand.u32 %v760, 4294901760
    %762 = vmatpush1.msra.mxu0 %v761
    %763 = vmatprep.subr.mxu0 0.0
    %v764 = vand.u32 %v58, 4294901760
    %v765 = vsub.f32 %v58, %v764
    %v766 = vand.u32 %v765, 4294901760
    %767 = vmatpush1.msra.mxu0 %v766
    %768 = vmatprep.subr.mxu0 0.0
    %v769 = vand.u32 %v59, 4294901760
    %v770 = vsub.f32 %v59, %v769
    %v771 = vand.u32 %v770, 4294901760
    %772 = vmatpush1.msra.mxu0 %v771
    %773 = vmatprep.subr.mxu0 0.0
    %v774 = vand.u32 %v60, 4294901760
    %v775 = vsub.f32 %v60, %v774
    %v776 = vand.u32 %v775, 4294901760
    %777 = vmatpush1.msra.mxu0 %v776
    %778 = vmatprep.subr.mxu0 0.0
    %v779 = vand.u32 %v61, 4294901760
    %v780 = vsub.f32 %v61, %v779
    %v781 = vand.u32 %v780, 4294901760
    %782 = vmatpush1.msra.mxu0 %v781
    %783 = vmatprep.subr.mxu0 0.0
    %v784 = vand.u32 %v62, 4294901760
    %v785 = vsub.f32 %v62, %v784
    %v786 = vand.u32 %v785, 4294901760
    %787 = vmatpush1.msra.mxu0 %v786
    %788 = vmatprep.subr.mxu0 0.0
    %v789 = vand.u32 %v63, 4294901760
    %v790 = vsub.f32 %v63, %v789
    %v791 = vand.u32 %v790, 4294901760
    %792 = vmatpush1.msra.mxu0 %v791
    %793 = vmatprep.subr.mxu0 0.0
    %v794 = vand.u32 %v64, 4294901760
    %v795 = vsub.f32 %v64, %v794
    %v796 = vand.u32 %v795, 4294901760
    %797 = vmatpush1.msra.mxu0 %v796
    %798 = vmatprep.subr.mxu0 0.0
    %v799 = vand.u32 %v65, 4294901760
    %v800 = vsub.f32 %v65, %v799
    %v801 = vand.u32 %v800, 4294901760
    %802 = vmatpush1.msra.mxu0 %v801
    %803 = vmatprep.subr.mxu0 0.0
    %v804 = vand.u32 %v66, 4294901760
    %v805 = vsub.f32 %v66, %v804
    %v806 = vand.u32 %v805, 4294901760
    %807 = vmatpush1.msra.mxu0 %v806
    %808 = vmatprep.subr.mxu0 0.0
    %v809 = vand.u32 %v67, 4294901760
    %v810 = vsub.f32 %v67, %v809
    %v811 = vand.u32 %v810, 4294901760
    %812 = vmatpush1.msra.mxu0 %v811
    %813 = vmatprep.subr.mxu0 0.0
    %v814 = vand.u32 %v68, 4294901760
    %v815 = vsub.f32 %v68, %v814
    %v816 = vand.u32 %v815, 4294901760
    %817 = vmatpush1.msra.mxu0 %v816
    %818 = vmatprep.subr.mxu0 0.0
    %v819 = vand.u32 %v69, 4294901760
    %v820 = vsub.f32 %v69, %v819
    %v821 = vand.u32 %v820, 4294901760
    %822 = vmatpush1.msra.mxu0 %v821
    %v823 = vand.u32 %v37, 4294901760
    %824 = vmatprep.mubr.f32.mxu0 %v823
    %v825 = vand.u32 %v36, 4294901760
    %826 = vmatmul.mubr.f32.gmra.mrb[0].mxu0 %v825
    %v827 = vpop.f32.mrb[0].mxu0
    %v828 = vadd.f32 %v660, %v827
    %v829 = vpop.f32.mrb[0].mxu0
    %830 = vdwg.mxu0
    %831 = vmatprep.subr.mxu0 0.0
    %v832 = vand.u32 %v38, 4294901760
    %833 = vmatpush1.msra.mxu0 %v832
    %834 = vmatprep.subr.mxu0 0.0
    %v835 = vand.u32 %v39, 4294901760
    %836 = vmatpush1.msra.mxu0 %v835
    %837 = vmatprep.subr.mxu0 0.0
    %v838 = vand.u32 %v40, 4294901760
    %839 = vmatpush1.msra.mxu0 %v838
    %840 = vmatprep.subr.mxu0 0.0
    %v841 = vand.u32 %v41, 4294901760
    %842 = vmatpush1.msra.mxu0 %v841
    %843 = vmatprep.subr.mxu0 0.0
    %v844 = vand.u32 %v42, 4294901760
    %845 = vmatpush1.msra.mxu0 %v844
    %846 = vmatprep.subr.mxu0 0.0
    %v847 = vand.u32 %v43, 4294901760
    %848 = vmatpush1.msra.mxu0 %v847
    %849 = vmatprep.subr.mxu0 0.0
    %v850 = vand.u32 %v44, 4294901760
    %851 = vmatpush1.msra.mxu0 %v850
    %852 = vmatprep.subr.mxu0 0.0
    %v853 = vand.u32 %v45, 4294901760
    %854 = vmatpush1.msra.mxu0 %v853
    %855 = vmatprep.subr.mxu0 0.0
    %v856 = vand.u32 %v46, 4294901760
    %857 = vmatpush1.msra.mxu0 %v856
    %858 = vmatprep.subr.mxu0 0.0
    %v859 = vand.u32 %v47, 4294901760
    %860 = vmatpush1.msra.mxu0 %v859
    %861 = vmatprep.subr.mxu0 0.0
    %v862 = vand.u32 %v48, 4294901760
    %863 = vmatpush1.msra.mxu0 %v862
    %864 = vmatprep.subr.mxu0 0.0
    %v865 = vand.u32 %v49, 4294901760
    %866 = vmatpush1.msra.mxu0 %v865
    %867 = vmatprep.subr.mxu0 0.0
    %v868 = vand.u32 %v50, 4294901760
    %869 = vmatpush1.msra.mxu0 %v868
    %870 = vmatprep.subr.mxu0 0.0
    %v871 = vand.u32 %v51, 4294901760
    %872 = vmatpush1.msra.mxu0 %v871
    %873 = vmatprep.subr.mxu0 0.0
    %v874 = vand.u32 %v52, 4294901760
    %875 = vmatpush1.msra.mxu0 %v874
    %876 = vmatprep.subr.mxu0 0.0
    %v877 = vand.u32 %v53, 4294901760
    %878 = vmatpush1.msra.mxu0 %v877
    %879 = vmatprep.subr.mxu0 0.0
    %v880 = vand.u32 %v54, 4294901760
    %881 = vmatpush1.msra.mxu0 %v880
    %882 = vmatprep.subr.mxu0 0.0
    %v883 = vand.u32 %v55, 4294901760
    %884 = vmatpush1.msra.mxu0 %v883
    %885 = vmatprep.subr.mxu0 0.0
    %v886 = vand.u32 %v56, 4294901760
    %887 = vmatpush1.msra.mxu0 %v886
    %888 = vmatprep.subr.mxu0 0.0
    %v889 = vand.u32 %v57, 4294901760
    %890 = vmatpush1.msra.mxu0 %v889
    %891 = vmatprep.subr.mxu0 0.0
    %v892 = vand.u32 %v58, 4294901760
    %893 = vmatpush1.msra.mxu0 %v892
    %894 = vmatprep.subr.mxu0 0.0
    %v895 = vand.u32 %v59, 4294901760
    %896 = vmatpush1.msra.mxu0 %v895
    %897 = vmatprep.subr.mxu0 0.0
    %v898 = vand.u32 %v60, 4294901760
    %899 = vmatpush1.msra.mxu0 %v898
    %900 = vmatprep.subr.mxu0 0.0
    %v901 = vand.u32 %v61, 4294901760
    %902 = vmatpush1.msra.mxu0 %v901
    %903 = vmatprep.subr.mxu0 0.0
    %v904 = vand.u32 %v62, 4294901760
    %905 = vmatpush1.msra.mxu0 %v904
    %906 = vmatprep.subr.mxu0 0.0
    %v907 = vand.u32 %v63, 4294901760
    %908 = vmatpush1.msra.mxu0 %v907
    %909 = vmatprep.subr.mxu0 0.0
    %v910 = vand.u32 %v64, 4294901760
    %911 = vmatpush1.msra.mxu0 %v910
    %912 = vmatprep.subr.mxu0 0.0
    %v913 = vand.u32 %v65, 4294901760
    %914 = vmatpush1.msra.mxu0 %v913
    %915 = vmatprep.subr.mxu0 0.0
    %v916 = vand.u32 %v66, 4294901760
    %917 = vmatpush1.msra.mxu0 %v916
    %918 = vmatprep.subr.mxu0 0.0
    %v919 = vand.u32 %v67, 4294901760
    %920 = vmatpush1.msra.mxu0 %v919
    %921 = vmatprep.subr.mxu0 0.0
    %v922 = vand.u32 %v68, 4294901760
    %923 = vmatpush1.msra.mxu0 %v922
    %924 = vmatprep.subr.mxu0 0.0
    %v925 = vand.u32 %v69, 4294901760
    %926 = vmatpush1.msra.mxu0 %v925
    %v927 = vand.u32 %v37, 4294901760
    %928 = vmatprep.mubr.f32.mxu0 %v927
    %v929 = vand.u32 %v36, 4294901760
    %930 = vmatmul.mubr.f32.gmra.mrb[0].mxu0 %v929
    %v931 = vpop.f32.mrb[0].mxu0
    %v932 = vadd.f32 %v828, %v931
    %v933 = vpop.f32.mrb[0].mxu0
    %934 = vdwg.mxu0
    %v935 = vxor.u32 %v932, 2147483648
    %v936 = vmul.f32 %v935, 1.442695
    %v937 = vpow.pop %v936
    %v938 = vadd.f32 %v937, 1.0
    %v939 = vrcp.pop %v938
    %v940 = vmul.f32 1.0, %v939
    %942 = vrot.lane.b32.xlu0 %v72, 120
    %v943 = vpop.permute.xlu0 %942
    %v945 = vmul.f32 %v940, %v943
    %vm946 = vcmask 64512
    %v947 = vsel %vm946, %v945, 0.0
    %948 = vadd.xlane.f32.xlu0 %v947
    %v949 = vpop.xlane.xlu0 %948
    %vm950 = vcmask 7168
    %951 = vst.msk [vmem:[%s8] sm:$0xff] %vm950, %v949
    %v952 = vld [vmem:[%s5] sm:$0xff]
    %v953 = vld [vmem:[%s5 + $0x8] sm:$0xff]
    %v954 = vld [vmem:[%s5 + $0x10] sm:$0xff]
    %v955 = vld [vmem:[%s5 + $0x18] sm:$0xff]
    %v956 = vld [vmem:[%s5 + $0x20] sm:$0xff]
    %v957 = vld [vmem:[%s5 + $0x28] sm:$0xff]
    %v958 = vld [vmem:[%s5 + $0x30] sm:$0xff]
    %v959 = vld [vmem:[%s5 + $0x38] sm:$0xff]
    %v960 = vld [vmem:[%s5 + $0x40] sm:$0xff]
    %v961 = vld [vmem:[%s5 + $0x48] sm:$0xff]
    %v962 = vld [vmem:[%s5 + $0x50] sm:$0xff]
    %v963 = vld [vmem:[%s5 + $0x58] sm:$0xff]
    %v964 = vld [vmem:[%s5 + $0x60] sm:$0xff]
    %v965 = vld [vmem:[%s5 + $0x68] sm:$0xff]
    %v966 = vld [vmem:[%s5 + $0x70] sm:$0xff]
    %v967 = vld [vmem:[%s5 + $0x78] sm:$0xff]
    %v968 = vld [vmem:[%s5 + $0x80] sm:$0xff]
    %v969 = vld [vmem:[%s5 + $0x88] sm:$0xff]
    %v970 = vld [vmem:[%s5 + $0x90] sm:$0xff]
    %v971 = vld [vmem:[%s5 + $0x98] sm:$0xff]
    %v972 = vld [vmem:[%s5 + $0xa0] sm:$0xff]
    %v973 = vld [vmem:[%s5 + $0xa8] sm:$0xff]
    %v974 = vld [vmem:[%s5 + $0xb0] sm:$0xff]
    %v975 = vld [vmem:[%s5 + $0xb8] sm:$0xff]
    %v976 = vld [vmem:[%s5 + $0xc0] sm:$0xff]
    %v977 = vld [vmem:[%s5 + $0xc8] sm:$0xff]
    %v978 = vld [vmem:[%s5 + $0xd0] sm:$0xff]
    %v979 = vld [vmem:[%s5 + $0xd8] sm:$0xff]
    %v980 = vld [vmem:[%s5 + $0xe0] sm:$0xff]
    %v981 = vld [vmem:[%s5 + $0xe8] sm:$0xff]
    %v982 = vld [vmem:[%s5 + $0xf0] sm:$0xff]
    %v983 = vld [vmem:[%s5 + $0xf8] sm:$0xff]
    %v984 = vld [vmem:[%s6] sm:$0xff]
    %v985 = vld [vmem:[%s6 + $0x8] sm:$0xff]
    %v986 = vld [vmem:[%s6 + $0x10] sm:$0xff]
    %v987 = vld [vmem:[%s6 + $0x18] sm:$0xff]
    %v988 = vld [vmem:[%s6 + $0x20] sm:$0xff]
    %v989 = vld [vmem:[%s6 + $0x28] sm:$0xff]
    %v990 = vld [vmem:[%s6 + $0x30] sm:$0xff]
    %v991 = vld [vmem:[%s6 + $0x38] sm:$0xff]
    %v992 = vld [vmem:[%s6 + $0x40] sm:$0xff]
    %v993 = vld [vmem:[%s6 + $0x48] sm:$0xff]
    %v994 = vld [vmem:[%s6 + $0x50] sm:$0xff]
    %v995 = vld [vmem:[%s6 + $0x58] sm:$0xff]
    %v996 = vld [vmem:[%s6 + $0x60] sm:$0xff]
    %v997 = vld [vmem:[%s6 + $0x68] sm:$0xff]
    %v998 = vld [vmem:[%s6 + $0x70] sm:$0xff]
    %v999 = vld [vmem:[%s6 + $0x78] sm:$0xff]
    %v1000 = vld [vmem:[%s6 + $0x80] sm:$0xff]
    %v1001 = vld [vmem:[%s6 + $0x88] sm:$0xff]
    %v1002 = vld [vmem:[%s6 + $0x90] sm:$0xff]
    %v1003 = vld [vmem:[%s6 + $0x98] sm:$0xff]
    %v1004 = vld [vmem:[%s6 + $0xa0] sm:$0xff]
    %v1005 = vld [vmem:[%s6 + $0xa8] sm:$0xff]
    %v1006 = vld [vmem:[%s6 + $0xb0] sm:$0xff]
    %v1007 = vld [vmem:[%s6 + $0xb8] sm:$0xff]
    %v1008 = vld [vmem:[%s6 + $0xc0] sm:$0xff]
    %v1009 = vld [vmem:[%s6 + $0xc8] sm:$0xff]
    %v1010 = vld [vmem:[%s6 + $0xd0] sm:$0xff]
    %v1011 = vld [vmem:[%s6 + $0xd8] sm:$0xff]
    %v1012 = vld [vmem:[%s6 + $0xe0] sm:$0xff]
    %v1013 = vld [vmem:[%s6 + $0xe8] sm:$0xff]
    %v1014 = vld [vmem:[%s6 + $0xf0] sm:$0xff]
    %v1015 = vld [vmem:[%s6 + $0xf8] sm:$0xff]
    %1016 = vmatprep.subr.mxu0 0.0
    %v1017 = vand.u32 %v984, 4294901760
    %1018 = vmatpush1.msra.mxu0 %v1017
    %1019 = vmatprep.subr.mxu0 0.0
    %v1020 = vand.u32 %v985, 4294901760
    %1021 = vmatpush1.msra.mxu0 %v1020
    %1022 = vmatprep.subr.mxu0 0.0
    %v1023 = vand.u32 %v986, 4294901760
    %1024 = vmatpush1.msra.mxu0 %v1023
    %1025 = vmatprep.subr.mxu0 0.0
    %v1026 = vand.u32 %v987, 4294901760
    %1027 = vmatpush1.msra.mxu0 %v1026
    %1028 = vmatprep.subr.mxu0 0.0
    %v1029 = vand.u32 %v988, 4294901760
    %1030 = vmatpush1.msra.mxu0 %v1029
    %1031 = vmatprep.subr.mxu0 0.0
    %v1032 = vand.u32 %v989, 4294901760
    %1033 = vmatpush1.msra.mxu0 %v1032
    %1034 = vmatprep.subr.mxu0 0.0
    %v1035 = vand.u32 %v990, 4294901760
    %1036 = vmatpush1.msra.mxu0 %v1035
    %1037 = vmatprep.subr.mxu0 0.0
    %v1038 = vand.u32 %v991, 4294901760
    %1039 = vmatpush1.msra.mxu0 %v1038
    %1040 = vmatprep.subr.mxu0 0.0
    %v1041 = vand.u32 %v992, 4294901760
    %1042 = vmatpush1.msra.mxu0 %v1041
    %1043 = vmatprep.subr.mxu0 0.0
    %v1044 = vand.u32 %v993, 4294901760
    %1045 = vmatpush1.msra.mxu0 %v1044
    %1046 = vmatprep.subr.mxu0 0.0
    %v1047 = vand.u32 %v994, 4294901760
    %1048 = vmatpush1.msra.mxu0 %v1047
    %1049 = vmatprep.subr.mxu0 0.0
    %v1050 = vand.u32 %v995, 4294901760
    %1051 = vmatpush1.msra.mxu0 %v1050
    %1052 = vmatprep.subr.mxu0 0.0
    %v1053 = vand.u32 %v996, 4294901760
    %1054 = vmatpush1.msra.mxu0 %v1053
    %1055 = vmatprep.subr.mxu0 0.0
    %v1056 = vand.u32 %v997, 4294901760
    %1057 = vmatpush1.msra.mxu0 %v1056
    %1058 = vmatprep.subr.mxu0 0.0
    %v1059 = vand.u32 %v998, 4294901760
    %1060 = vmatpush1.msra.mxu0 %v1059
    %1061 = vmatprep.subr.mxu0 0.0
    %v1062 = vand.u32 %v999, 4294901760
    %1063 = vmatpush1.msra.mxu0 %v1062
    %1064 = vmatprep.subr.mxu0 0.0
    %v1065 = vand.u32 %v1000, 4294901760
    %1066 = vmatpush1.msra.mxu0 %v1065
    %1067 = vmatprep.subr.mxu0 0.0
    %v1068 = vand.u32 %v1001, 4294901760
    %1069 = vmatpush1.msra.mxu0 %v1068
    %1070 = vmatprep.subr.mxu0 0.0
    %v1071 = vand.u32 %v1002, 4294901760
    %1072 = vmatpush1.msra.mxu0 %v1071
    %1073 = vmatprep.subr.mxu0 0.0
    %v1074 = vand.u32 %v1003, 4294901760
    %1075 = vmatpush1.msra.mxu0 %v1074
    %1076 = vmatprep.subr.mxu0 0.0
    %v1077 = vand.u32 %v1004, 4294901760
    %1078 = vmatpush1.msra.mxu0 %v1077
    %1079 = vmatprep.subr.mxu0 0.0
    %v1080 = vand.u32 %v1005, 4294901760
    %1081 = vmatpush1.msra.mxu0 %v1080
    %1082 = vmatprep.subr.mxu0 0.0
    %v1083 = vand.u32 %v1006, 4294901760
    %1084 = vmatpush1.msra.mxu0 %v1083
    %1085 = vmatprep.subr.mxu0 0.0
    %v1086 = vand.u32 %v1007, 4294901760
    %1087 = vmatpush1.msra.mxu0 %v1086
    %1088 = vmatprep.subr.mxu0 0.0
    %v1089 = vand.u32 %v1008, 4294901760
    %1090 = vmatpush1.msra.mxu0 %v1089
    %1091 = vmatprep.subr.mxu0 0.0
    %v1092 = vand.u32 %v1009, 4294901760
    %1093 = vmatpush1.msra.mxu0 %v1092
    %1094 = vmatprep.subr.mxu0 0.0
    %v1095 = vand.u32 %v1010, 4294901760
    %1096 = vmatpush1.msra.mxu0 %v1095
    %1097 = vmatprep.subr.mxu0 0.0
    %v1098 = vand.u32 %v1011, 4294901760
    %1099 = vmatpush1.msra.mxu0 %v1098
    %1100 = vmatprep.subr.mxu0 0.0
    %v1101 = vand.u32 %v1012, 4294901760
    %1102 = vmatpush1.msra.mxu0 %v1101
    %1103 = vmatprep.subr.mxu0 0.0
    %v1104 = vand.u32 %v1013, 4294901760
    %1105 = vmatpush1.msra.mxu0 %v1104
    %1106 = vmatprep.subr.mxu0 0.0
    %v1107 = vand.u32 %v1014, 4294901760
    %1108 = vmatpush1.msra.mxu0 %v1107
    %1109 = vmatprep.subr.mxu0 0.0
    %v1110 = vand.u32 %v1015, 4294901760
    %1111 = vmatpush1.msra.mxu0 %v1110
    %v1112 = vand.u32 %v35, 4294901760
    %v1113 = vsub.f32 %v35, %v1112
    %v1114 = vand.u32 %v1113, 4294901760
    %v1115 = vsub.f32 %v1113, %v1114
    %v1116 = vand.u32 %v1115, 4294901760
    %1117 = vmatprep.mubr.f32.mxu0 %v1116
    %v1118 = vand.u32 %v34, 4294901760
    %v1119 = vsub.f32 %v34, %v1118
    %v1120 = vand.u32 %v1119, 4294901760
    %v1121 = vsub.f32 %v1119, %v1120
    %v1122 = vand.u32 %v1121, 4294901760
    %1123 = vmatmul.mubr.f32.gmra.mrb[0].mxu0 %v1122
    %v1124 = vpop.f32.mrb[0].mxu0
    %v1125 = vadd.f32 0.0, %v1124
    %v1126 = vpop.f32.mrb[0].mxu0
    %1127 = vdwg.mxu0
    %1128 = vmatprep.subr.mxu0 0.0
    %v1129 = vand.u32 %v984, 4294901760
    %v1130 = vsub.f32 %v984, %v1129
    %v1131 = vand.u32 %v1130, 4294901760
    %v1132 = vsub.f32 %v1130, %v1131
    %v1133 = vand.u32 %v1132, 4294901760
    %1134 = vmatpush1.msra.mxu0 %v1133
    %1135 = vmatprep.subr.mxu0 0.0
    %v1136 = vand.u32 %v985, 4294901760
    %v1137 = vsub.f32 %v985, %v1136
    %v1138 = vand.u32 %v1137, 4294901760
    %v1139 = vsub.f32 %v1137, %v1138
    %v1140 = vand.u32 %v1139, 4294901760
    %1141 = vmatpush1.msra.mxu0 %v1140
    %1142 = vmatprep.subr.mxu0 0.0
    %v1143 = vand.u32 %v986, 4294901760
    %v1144 = vsub.f32 %v986, %v1143
    %v1145 = vand.u32 %v1144, 4294901760
    %v1146 = vsub.f32 %v1144, %v1145
    %v1147 = vand.u32 %v1146, 4294901760
    %1148 = vmatpush1.msra.mxu0 %v1147
    %1149 = vmatprep.subr.mxu0 0.0
    %v1150 = vand.u32 %v987, 4294901760
    %v1151 = vsub.f32 %v987, %v1150
    %v1152 = vand.u32 %v1151, 4294901760
    %v1153 = vsub.f32 %v1151, %v1152
    %v1154 = vand.u32 %v1153, 4294901760
    %1155 = vmatpush1.msra.mxu0 %v1154
    %1156 = vmatprep.subr.mxu0 0.0
    %v1157 = vand.u32 %v988, 4294901760
    %v1158 = vsub.f32 %v988, %v1157
    %v1159 = vand.u32 %v1158, 4294901760
    %v1160 = vsub.f32 %v1158, %v1159
    %v1161 = vand.u32 %v1160, 4294901760
    %1162 = vmatpush1.msra.mxu0 %v1161
    %1163 = vmatprep.subr.mxu0 0.0
    %v1164 = vand.u32 %v989, 4294901760
    %v1165 = vsub.f32 %v989, %v1164
    %v1166 = vand.u32 %v1165, 4294901760
    %v1167 = vsub.f32 %v1165, %v1166
    %v1168 = vand.u32 %v1167, 4294901760
    %1169 = vmatpush1.msra.mxu0 %v1168
    %1170 = vmatprep.subr.mxu0 0.0
    %v1171 = vand.u32 %v990, 4294901760
    %v1172 = vsub.f32 %v990, %v1171
    %v1173 = vand.u32 %v1172, 4294901760
    %v1174 = vsub.f32 %v1172, %v1173
    %v1175 = vand.u32 %v1174, 4294901760
    %1176 = vmatpush1.msra.mxu0 %v1175
    %1177 = vmatprep.subr.mxu0 0.0
    %v1178 = vand.u32 %v991, 4294901760
    %v1179 = vsub.f32 %v991, %v1178
    %v1180 = vand.u32 %v1179, 4294901760
    %v1181 = vsub.f32 %v1179, %v1180
    %v1182 = vand.u32 %v1181, 4294901760
    %1183 = vmatpush1.msra.mxu0 %v1182
    %1184 = vmatprep.subr.mxu0 0.0
    %v1185 = vand.u32 %v992, 4294901760
    %v1186 = vsub.f32 %v992, %v1185
    %v1187 = vand.u32 %v1186, 4294901760
    %v1188 = vsub.f32 %v1186, %v1187
    %v1189 = vand.u32 %v1188, 4294901760
    %1190 = vmatpush1.msra.mxu0 %v1189
    %1191 = vmatprep.subr.mxu0 0.0
    %v1192 = vand.u32 %v993, 4294901760
    %v1193 = vsub.f32 %v993, %v1192
    %v1194 = vand.u32 %v1193, 4294901760
    %v1195 = vsub.f32 %v1193, %v1194
    %v1196 = vand.u32 %v1195, 4294901760
    %1197 = vmatpush1.msra.mxu0 %v1196
    %1198 = vmatprep.subr.mxu0 0.0
    %v1199 = vand.u32 %v994, 4294901760
    %v1200 = vsub.f32 %v994, %v1199
    %v1201 = vand.u32 %v1200, 4294901760
    %v1202 = vsub.f32 %v1200, %v1201
    %v1203 = vand.u32 %v1202, 4294901760
    %1204 = vmatpush1.msra.mxu0 %v1203
    %1205 = vmatprep.subr.mxu0 0.0
    %v1206 = vand.u32 %v995, 4294901760
    %v1207 = vsub.f32 %v995, %v1206
    %v1208 = vand.u32 %v1207, 4294901760
    %v1209 = vsub.f32 %v1207, %v1208
    %v1210 = vand.u32 %v1209, 4294901760
    %1211 = vmatpush1.msra.mxu0 %v1210
    %1212 = vmatprep.subr.mxu0 0.0
    %v1213 = vand.u32 %v996, 4294901760
    %v1214 = vsub.f32 %v996, %v1213
    %v1215 = vand.u32 %v1214, 4294901760
    %v1216 = vsub.f32 %v1214, %v1215
    %v1217 = vand.u32 %v1216, 4294901760
    %1218 = vmatpush1.msra.mxu0 %v1217
    %1219 = vmatprep.subr.mxu0 0.0
    %v1220 = vand.u32 %v997, 4294901760
    %v1221 = vsub.f32 %v997, %v1220
    %v1222 = vand.u32 %v1221, 4294901760
    %v1223 = vsub.f32 %v1221, %v1222
    %v1224 = vand.u32 %v1223, 4294901760
    %1225 = vmatpush1.msra.mxu0 %v1224
    %1226 = vmatprep.subr.mxu0 0.0
    %v1227 = vand.u32 %v998, 4294901760
    %v1228 = vsub.f32 %v998, %v1227
    %v1229 = vand.u32 %v1228, 4294901760
    %v1230 = vsub.f32 %v1228, %v1229
    %v1231 = vand.u32 %v1230, 4294901760
    %1232 = vmatpush1.msra.mxu0 %v1231
    %1233 = vmatprep.subr.mxu0 0.0
    %v1234 = vand.u32 %v999, 4294901760
    %v1235 = vsub.f32 %v999, %v1234
    %v1236 = vand.u32 %v1235, 4294901760
    %v1237 = vsub.f32 %v1235, %v1236
    %v1238 = vand.u32 %v1237, 4294901760
    %1239 = vmatpush1.msra.mxu0 %v1238
    %1240 = vmatprep.subr.mxu0 0.0
    %v1241 = vand.u32 %v1000, 4294901760
    %v1242 = vsub.f32 %v1000, %v1241
    %v1243 = vand.u32 %v1242, 4294901760
    %v1244 = vsub.f32 %v1242, %v1243
    %v1245 = vand.u32 %v1244, 4294901760
    %1246 = vmatpush1.msra.mxu0 %v1245
    %1247 = vmatprep.subr.mxu0 0.0
    %v1248 = vand.u32 %v1001, 4294901760
    %v1249 = vsub.f32 %v1001, %v1248
    %v1250 = vand.u32 %v1249, 4294901760
    %v1251 = vsub.f32 %v1249, %v1250
    %v1252 = vand.u32 %v1251, 4294901760
    %1253 = vmatpush1.msra.mxu0 %v1252
    %1254 = vmatprep.subr.mxu0 0.0
    %v1255 = vand.u32 %v1002, 4294901760
    %v1256 = vsub.f32 %v1002, %v1255
    %v1257 = vand.u32 %v1256, 4294901760
    %v1258 = vsub.f32 %v1256, %v1257
    %v1259 = vand.u32 %v1258, 4294901760
    %1260 = vmatpush1.msra.mxu0 %v1259
    %1261 = vmatprep.subr.mxu0 0.0
    %v1262 = vand.u32 %v1003, 4294901760
    %v1263 = vsub.f32 %v1003, %v1262
    %v1264 = vand.u32 %v1263, 4294901760
    %v1265 = vsub.f32 %v1263, %v1264
    %v1266 = vand.u32 %v1265, 4294901760
    %1267 = vmatpush1.msra.mxu0 %v1266
    %1268 = vmatprep.subr.mxu0 0.0
    %v1269 = vand.u32 %v1004, 4294901760
    %v1270 = vsub.f32 %v1004, %v1269
    %v1271 = vand.u32 %v1270, 4294901760
    %v1272 = vsub.f32 %v1270, %v1271
    %v1273 = vand.u32 %v1272, 4294901760
    %1274 = vmatpush1.msra.mxu0 %v1273
    %1275 = vmatprep.subr.mxu0 0.0
    %v1276 = vand.u32 %v1005, 4294901760
    %v1277 = vsub.f32 %v1005, %v1276
    %v1278 = vand.u32 %v1277, 4294901760
    %v1279 = vsub.f32 %v1277, %v1278
    %v1280 = vand.u32 %v1279, 4294901760
    %1281 = vmatpush1.msra.mxu0 %v1280
    %1282 = vmatprep.subr.mxu0 0.0
    %v1283 = vand.u32 %v1006, 4294901760
    %v1284 = vsub.f32 %v1006, %v1283
    %v1285 = vand.u32 %v1284, 4294901760
    %v1286 = vsub.f32 %v1284, %v1285
    %v1287 = vand.u32 %v1286, 4294901760
    %1288 = vmatpush1.msra.mxu0 %v1287
    %1289 = vmatprep.subr.mxu0 0.0
    %v1290 = vand.u32 %v1007, 4294901760
    %v1291 = vsub.f32 %v1007, %v1290
    %v1292 = vand.u32 %v1291, 4294901760
    %v1293 = vsub.f32 %v1291, %v1292
    %v1294 = vand.u32 %v1293, 4294901760
    %1295 = vmatpush1.msra.mxu0 %v1294
    %1296 = vmatprep.subr.mxu0 0.0
    %v1297 = vand.u32 %v1008, 4294901760
    %v1298 = vsub.f32 %v1008, %v1297
    %v1299 = vand.u32 %v1298, 4294901760
    %v1300 = vsub.f32 %v1298, %v1299
    %v1301 = vand.u32 %v1300, 4294901760
    %1302 = vmatpush1.msra.mxu0 %v1301
    %1303 = vmatprep.subr.mxu0 0.0
    %v1304 = vand.u32 %v1009, 4294901760
    %v1305 = vsub.f32 %v1009, %v1304
    %v1306 = vand.u32 %v1305, 4294901760
    %v1307 = vsub.f32 %v1305, %v1306
    %v1308 = vand.u32 %v1307, 4294901760
    %1309 = vmatpush1.msra.mxu0 %v1308
    %1310 = vmatprep.subr.mxu0 0.0
    %v1311 = vand.u32 %v1010, 4294901760
    %v1312 = vsub.f32 %v1010, %v1311
    %v1313 = vand.u32 %v1312, 4294901760
    %v1314 = vsub.f32 %v1312, %v1313
    %v1315 = vand.u32 %v1314, 4294901760
    %1316 = vmatpush1.msra.mxu0 %v1315
    %1317 = vmatprep.subr.mxu0 0.0
    %v1318 = vand.u32 %v1011, 4294901760
    %v1319 = vsub.f32 %v1011, %v1318
    %v1320 = vand.u32 %v1319, 4294901760
    %v1321 = vsub.f32 %v1319, %v1320
    %v1322 = vand.u32 %v1321, 4294901760
    %1323 = vmatpush1.msra.mxu0 %v1322
    %1324 = vmatprep.subr.mxu0 0.0
    %v1325 = vand.u32 %v1012, 4294901760
    %v1326 = vsub.f32 %v1012, %v1325
    %v1327 = vand.u32 %v1326, 4294901760
    %v1328 = vsub.f32 %v1326, %v1327
    %v1329 = vand.u32 %v1328, 4294901760
    %1330 = vmatpush1.msra.mxu0 %v1329
    %1331 = vmatprep.subr.mxu0 0.0
    %v1332 = vand.u32 %v1013, 4294901760
    %v1333 = vsub.f32 %v1013, %v1332
    %v1334 = vand.u32 %v1333, 4294901760
    %v1335 = vsub.f32 %v1333, %v1334
    %v1336 = vand.u32 %v1335, 4294901760
    %1337 = vmatpush1.msra.mxu0 %v1336
    %1338 = vmatprep.subr.mxu0 0.0
    %v1339 = vand.u32 %v1014, 4294901760
    %v1340 = vsub.f32 %v1014, %v1339
    %v1341 = vand.u32 %v1340, 4294901760
    %v1342 = vsub.f32 %v1340, %v1341
    %v1343 = vand.u32 %v1342, 4294901760
    %1344 = vmatpush1.msra.mxu0 %v1343
    %1345 = vmatprep.subr.mxu0 0.0
    %v1346 = vand.u32 %v1015, 4294901760
    %v1347 = vsub.f32 %v1015, %v1346
    %v1348 = vand.u32 %v1347, 4294901760
    %v1349 = vsub.f32 %v1347, %v1348
    %v1350 = vand.u32 %v1349, 4294901760
    %1351 = vmatpush1.msra.mxu0 %v1350
    %v1352 = vand.u32 %v35, 4294901760
    %1353 = vmatprep.mubr.f32.mxu0 %v1352
    %v1354 = vand.u32 %v34, 4294901760
    %1355 = vmatmul.mubr.f32.gmra.mrb[0].mxu0 %v1354
    %v1356 = vpop.f32.mrb[0].mxu0
    %v1357 = vadd.f32 %v1125, %v1356
    %v1358 = vpop.f32.mrb[0].mxu0
    %1359 = vdwg.mxu0
    %1360 = vmatprep.subr.mxu0 0.0
    %v1361 = vand.u32 %v984, 4294901760
    %v1362 = vsub.f32 %v984, %v1361
    %1363 = vmatpush1.msra.mxu0 %v1362
    %1364 = vmatprep.subr.mxu0 0.0
    %v1365 = vand.u32 %v985, 4294901760
    %v1366 = vsub.f32 %v985, %v1365
    %1367 = vmatpush1.msra.mxu0 %v1366
    %1368 = vmatprep.subr.mxu0 0.0
    %v1369 = vand.u32 %v986, 4294901760
    %v1370 = vsub.f32 %v986, %v1369
    %1371 = vmatpush1.msra.mxu0 %v1370
    %1372 = vmatprep.subr.mxu0 0.0
    %v1373 = vand.u32 %v987, 4294901760
    %v1374 = vsub.f32 %v987, %v1373
    %1375 = vmatpush1.msra.mxu0 %v1374
    %1376 = vmatprep.subr.mxu0 0.0
    %v1377 = vand.u32 %v988, 4294901760
    %v1378 = vsub.f32 %v988, %v1377
    %1379 = vmatpush1.msra.mxu0 %v1378
    %1380 = vmatprep.subr.mxu0 0.0
    %v1381 = vand.u32 %v989, 4294901760
    %v1382 = vsub.f32 %v989, %v1381
    %1383 = vmatpush1.msra.mxu0 %v1382
    %1384 = vmatprep.subr.mxu0 0.0
    %v1385 = vand.u32 %v990, 4294901760
    %v1386 = vsub.f32 %v990, %v1385
    %1387 = vmatpush1.msra.mxu0 %v1386
    %1388 = vmatprep.subr.mxu0 0.0
    %v1389 = vand.u32 %v991, 4294901760
    %v1390 = vsub.f32 %v991, %v1389
    %1391 = vmatpush1.msra.mxu0 %v1390
    %1392 = vmatprep.subr.mxu0 0.0
    %v1393 = vand.u32 %v992, 4294901760
    %v1394 = vsub.f32 %v992, %v1393
    %1395 = vmatpush1.msra.mxu0 %v1394
    %1396 = vmatprep.subr.mxu0 0.0
    %v1397 = vand.u32 %v993, 4294901760
    %v1398 = vsub.f32 %v993, %v1397
    %1399 = vmatpush1.msra.mxu0 %v1398
    %1400 = vmatprep.subr.mxu0 0.0
    %v1401 = vand.u32 %v994, 4294901760
    %v1402 = vsub.f32 %v994, %v1401
    %1403 = vmatpush1.msra.mxu0 %v1402
    %1404 = vmatprep.subr.mxu0 0.0
    %v1405 = vand.u32 %v995, 4294901760
    %v1406 = vsub.f32 %v995, %v1405
    %1407 = vmatpush1.msra.mxu0 %v1406
    %1408 = vmatprep.subr.mxu0 0.0
    %v1409 = vand.u32 %v996, 4294901760
    %v1410 = vsub.f32 %v996, %v1409
    %1411 = vmatpush1.msra.mxu0 %v1410
    %1412 = vmatprep.subr.mxu0 0.0
    %v1413 = vand.u32 %v997, 4294901760
    %v1414 = vsub.f32 %v997, %v1413
    %1415 = vmatpush1.msra.mxu0 %v1414
    %1416 = vmatprep.subr.mxu0 0.0
    %v1417 = vand.u32 %v998, 4294901760
    %v1418 = vsub.f32 %v998, %v1417
    %1419 = vmatpush1.msra.mxu0 %v1418
    %1420 = vmatprep.subr.mxu0 0.0
    %v1421 = vand.u32 %v999, 4294901760
    %v1422 = vsub.f32 %v999, %v1421
    %1423 = vmatpush1.msra.mxu0 %v1422
    %1424 = vmatprep.subr.mxu0 0.0
    %v1425 = vand.u32 %v1000, 4294901760
    %v1426 = vsub.f32 %v1000, %v1425
    %1427 = vmatpush1.msra.mxu0 %v1426
    %1428 = vmatprep.subr.mxu0 0.0
    %v1429 = vand.u32 %v1001, 4294901760
    %v1430 = vsub.f32 %v1001, %v1429
    %1431 = vmatpush1.msra.mxu0 %v1430
    %1432 = vmatprep.subr.mxu0 0.0
    %v1433 = vand.u32 %v1002, 4294901760
    %v1434 = vsub.f32 %v1002, %v1433
    %1435 = vmatpush1.msra.mxu0 %v1434
    %1436 = vmatprep.subr.mxu0 0.0
    %v1437 = vand.u32 %v1003, 4294901760
    %v1438 = vsub.f32 %v1003, %v1437
    %1439 = vmatpush1.msra.mxu0 %v1438
    %1440 = vmatprep.subr.mxu0 0.0
    %v1441 = vand.u32 %v1004, 4294901760
    %v1442 = vsub.f32 %v1004, %v1441
    %1443 = vmatpush1.msra.mxu0 %v1442
    %1444 = vmatprep.subr.mxu0 0.0
    %v1445 = vand.u32 %v1005, 4294901760
    %v1446 = vsub.f32 %v1005, %v1445
    %1447 = vmatpush1.msra.mxu0 %v1446
    %1448 = vmatprep.subr.mxu0 0.0
    %v1449 = vand.u32 %v1006, 4294901760
    %v1450 = vsub.f32 %v1006, %v1449
    %1451 = vmatpush1.msra.mxu0 %v1450
    %1452 = vmatprep.subr.mxu0 0.0
    %v1453 = vand.u32 %v1007, 4294901760
    %v1454 = vsub.f32 %v1007, %v1453
    %1455 = vmatpush1.msra.mxu0 %v1454
    %1456 = vmatprep.subr.mxu0 0.0
    %v1457 = vand.u32 %v1008, 4294901760
    %v1458 = vsub.f32 %v1008, %v1457
    %1459 = vmatpush1.msra.mxu0 %v1458
    %1460 = vmatprep.subr.mxu0 0.0
    %v1461 = vand.u32 %v1009, 4294901760
    %v1462 = vsub.f32 %v1009, %v1461
    %1463 = vmatpush1.msra.mxu0 %v1462
    %1464 = vmatprep.subr.mxu0 0.0
    %v1465 = vand.u32 %v1010, 4294901760
    %v1466 = vsub.f32 %v1010, %v1465
    %1467 = vmatpush1.msra.mxu0 %v1466
    %1468 = vmatprep.subr.mxu0 0.0
    %v1469 = vand.u32 %v1011, 4294901760
    %v1470 = vsub.f32 %v1011, %v1469
    %1471 = vmatpush1.msra.mxu0 %v1470
    %1472 = vmatprep.subr.mxu0 0.0
    %v1473 = vand.u32 %v1012, 4294901760
    %v1474 = vsub.f32 %v1012, %v1473
    %1475 = vmatpush1.msra.mxu0 %v1474
    %1476 = vmatprep.subr.mxu0 0.0
    %v1477 = vand.u32 %v1013, 4294901760
    %v1478 = vsub.f32 %v1013, %v1477
    %1479 = vmatpush1.msra.mxu0 %v1478
    %1480 = vmatprep.subr.mxu0 0.0
    %v1481 = vand.u32 %v1014, 4294901760
    %v1482 = vsub.f32 %v1014, %v1481
    %1483 = vmatpush1.msra.mxu0 %v1482
    %1484 = vmatprep.subr.mxu0 0.0
    %v1485 = vand.u32 %v1015, 4294901760
    %v1486 = vsub.f32 %v1015, %v1485
    %1487 = vmatpush1.msra.mxu0 %v1486
    %v1488 = vand.u32 %v35, 4294901760
    %v1489 = vsub.f32 %v35, %v1488
    %1490 = vmatprep.mubr.f32.mxu0 %v1489
    %v1491 = vand.u32 %v34, 4294901760
    %v1492 = vsub.f32 %v34, %v1491
    %1493 = vmatmul.mubr.f32.gmra.mrb[0].mxu0 %v1492
    %v1494 = vpop.f32.mrb[0].mxu0
    %v1495 = vadd.f32 %v1357, %v1494
    %v1496 = vpop.f32.mrb[0].mxu0
    %1497 = vdwg.mxu0
    %1498 = vmatprep.subr.mxu0 0.0
    %v1499 = vand.u32 %v984, 4294901760
    %1500 = vmatpush1.msra.mxu0 %v1499
    %1501 = vmatprep.subr.mxu0 0.0
    %v1502 = vand.u32 %v985, 4294901760
    %1503 = vmatpush1.msra.mxu0 %v1502
    %1504 = vmatprep.subr.mxu0 0.0
    %v1505 = vand.u32 %v986, 4294901760
    %1506 = vmatpush1.msra.mxu0 %v1505
    %1507 = vmatprep.subr.mxu0 0.0
    %v1508 = vand.u32 %v987, 4294901760
    %1509 = vmatpush1.msra.mxu0 %v1508
    %1510 = vmatprep.subr.mxu0 0.0
    %v1511 = vand.u32 %v988, 4294901760
    %1512 = vmatpush1.msra.mxu0 %v1511
    %1513 = vmatprep.subr.mxu0 0.0
    %v1514 = vand.u32 %v989, 4294901760
    %1515 = vmatpush1.msra.mxu0 %v1514
    %1516 = vmatprep.subr.mxu0 0.0
    %v1517 = vand.u32 %v990, 4294901760
    %1518 = vmatpush1.msra.mxu0 %v1517
    %1519 = vmatprep.subr.mxu0 0.0
    %v1520 = vand.u32 %v991, 4294901760
    %1521 = vmatpush1.msra.mxu0 %v1520
    %1522 = vmatprep.subr.mxu0 0.0
    %v1523 = vand.u32 %v992, 4294901760
    %1524 = vmatpush1.msra.mxu0 %v1523
    %1525 = vmatprep.subr.mxu0 0.0
    %v1526 = vand.u32 %v993, 4294901760
    %1527 = vmatpush1.msra.mxu0 %v1526
    %1528 = vmatprep.subr.mxu0 0.0
    %v1529 = vand.u32 %v994, 4294901760
    %1530 = vmatpush1.msra.mxu0 %v1529
    %1531 = vmatprep.subr.mxu0 0.0
    %v1532 = vand.u32 %v995, 4294901760
    %1533 = vmatpush1.msra.mxu0 %v1532
    %1534 = vmatprep.subr.mxu0 0.0
    %v1535 = vand.u32 %v996, 4294901760
    %1536 = vmatpush1.msra.mxu0 %v1535
    %1537 = vmatprep.subr.mxu0 0.0
    %v1538 = vand.u32 %v997, 4294901760
    %1539 = vmatpush1.msra.mxu0 %v1538
    %1540 = vmatprep.subr.mxu0 0.0
    %v1541 = vand.u32 %v998, 4294901760
    %1542 = vmatpush1.msra.mxu0 %v1541
    %1543 = vmatprep.subr.mxu0 0.0
    %v1544 = vand.u32 %v999, 4294901760
    %1545 = vmatpush1.msra.mxu0 %v1544
    %1546 = vmatprep.subr.mxu0 0.0
    %v1547 = vand.u32 %v1000, 4294901760
    %1548 = vmatpush1.msra.mxu0 %v1547
    %1549 = vmatprep.subr.mxu0 0.0
    %v1550 = vand.u32 %v1001, 4294901760
    %1551 = vmatpush1.msra.mxu0 %v1550
    %1552 = vmatprep.subr.mxu0 0.0
    %v1553 = vand.u32 %v1002, 4294901760
    %1554 = vmatpush1.msra.mxu0 %v1553
    %1555 = vmatprep.subr.mxu0 0.0
    %v1556 = vand.u32 %v1003, 4294901760
    %1557 = vmatpush1.msra.mxu0 %v1556
    %1558 = vmatprep.subr.mxu0 0.0
    %v1559 = vand.u32 %v1004, 4294901760
    %1560 = vmatpush1.msra.mxu0 %v1559
    %1561 = vmatprep.subr.mxu0 0.0
    %v1562 = vand.u32 %v1005, 4294901760
    %1563 = vmatpush1.msra.mxu0 %v1562
    %1564 = vmatprep.subr.mxu0 0.0
    %v1565 = vand.u32 %v1006, 4294901760
    %1566 = vmatpush1.msra.mxu0 %v1565
    %1567 = vmatprep.subr.mxu0 0.0
    %v1568 = vand.u32 %v1007, 4294901760
    %1569 = vmatpush1.msra.mxu0 %v1568
    %1570 = vmatprep.subr.mxu0 0.0
    %v1571 = vand.u32 %v1008, 4294901760
    %1572 = vmatpush1.msra.mxu0 %v1571
    %1573 = vmatprep.subr.mxu0 0.0
    %v1574 = vand.u32 %v1009, 4294901760
    %1575 = vmatpush1.msra.mxu0 %v1574
    %1576 = vmatprep.subr.mxu0 0.0
    %v1577 = vand.u32 %v1010, 4294901760
    %1578 = vmatpush1.msra.mxu0 %v1577
    %1579 = vmatprep.subr.mxu0 0.0
    %v1580 = vand.u32 %v1011, 4294901760
    %1581 = vmatpush1.msra.mxu0 %v1580
    %1582 = vmatprep.subr.mxu0 0.0
    %v1583 = vand.u32 %v1012, 4294901760
    %1584 = vmatpush1.msra.mxu0 %v1583
    %1585 = vmatprep.subr.mxu0 0.0
    %v1586 = vand.u32 %v1013, 4294901760
    %1587 = vmatpush1.msra.mxu0 %v1586
    %1588 = vmatprep.subr.mxu0 0.0
    %v1589 = vand.u32 %v1014, 4294901760
    %1590 = vmatpush1.msra.mxu0 %v1589
    %1591 = vmatprep.subr.mxu0 0.0
    %v1592 = vand.u32 %v1015, 4294901760
    %1593 = vmatpush1.msra.mxu0 %v1592
    %v1594 = vand.u32 %v35, 4294901760
    %v1595 = vsub.f32 %v35, %v1594
    %v1596 = vand.u32 %v1595, 4294901760
    %1597 = vmatprep.mubr.f32.mxu0 %v1596
    %v1598 = vand.u32 %v34, 4294901760
    %v1599 = vsub.f32 %v34, %v1598
    %v1600 = vand.u32 %v1599, 4294901760
    %1601 = vmatmul.mubr.f32.gmra.mrb[0].mxu0 %v1600
    %v1602 = vpop.f32.mrb[0].mxu0
    %v1603 = vadd.f32 %v1495, %v1602
    %v1604 = vpop.f32.mrb[0].mxu0
    %1605 = vdwg.mxu0
    %1606 = vmatprep.subr.mxu0 0.0
    %v1607 = vand.u32 %v984, 4294901760
    %v1608 = vsub.f32 %v984, %v1607
    %v1609 = vand.u32 %v1608, 4294901760
    %1610 = vmatpush1.msra.mxu0 %v1609
    %1611 = vmatprep.subr.mxu0 0.0
    %v1612 = vand.u32 %v985, 4294901760
    %v1613 = vsub.f32 %v985, %v1612
    %v1614 = vand.u32 %v1613, 4294901760
    %1615 = vmatpush1.msra.mxu0 %v1614
    %1616 = vmatprep.subr.mxu0 0.0
    %v1617 = vand.u32 %v986, 4294901760
    %v1618 = vsub.f32 %v986, %v1617
    %v1619 = vand.u32 %v1618, 4294901760
    %1620 = vmatpush1.msra.mxu0 %v1619
    %1621 = vmatprep.subr.mxu0 0.0
    %v1622 = vand.u32 %v987, 4294901760
    %v1623 = vsub.f32 %v987, %v1622
    %v1624 = vand.u32 %v1623, 4294901760
    %1625 = vmatpush1.msra.mxu0 %v1624
    %1626 = vmatprep.subr.mxu0 0.0
    %v1627 = vand.u32 %v988, 4294901760
    %v1628 = vsub.f32 %v988, %v1627
    %v1629 = vand.u32 %v1628, 4294901760
    %1630 = vmatpush1.msra.mxu0 %v1629
    %1631 = vmatprep.subr.mxu0 0.0
    %v1632 = vand.u32 %v989, 4294901760
    %v1633 = vsub.f32 %v989, %v1632
    %v1634 = vand.u32 %v1633, 4294901760
    %1635 = vmatpush1.msra.mxu0 %v1634
    %1636 = vmatprep.subr.mxu0 0.0
    %v1637 = vand.u32 %v990, 4294901760
    %v1638 = vsub.f32 %v990, %v1637
    %v1639 = vand.u32 %v1638, 4294901760
    %1640 = vmatpush1.msra.mxu0 %v1639
    %1641 = vmatprep.subr.mxu0 0.0
    %v1642 = vand.u32 %v991, 4294901760
    %v1643 = vsub.f32 %v991, %v1642
    %v1644 = vand.u32 %v1643, 4294901760
    %1645 = vmatpush1.msra.mxu0 %v1644
    %1646 = vmatprep.subr.mxu0 0.0
    %v1647 = vand.u32 %v992, 4294901760
    %v1648 = vsub.f32 %v992, %v1647
    %v1649 = vand.u32 %v1648, 4294901760
    %1650 = vmatpush1.msra.mxu0 %v1649
    %1651 = vmatprep.subr.mxu0 0.0
    %v1652 = vand.u32 %v993, 4294901760
    %v1653 = vsub.f32 %v993, %v1652
    %v1654 = vand.u32 %v1653, 4294901760
    %1655 = vmatpush1.msra.mxu0 %v1654
    %1656 = vmatprep.subr.mxu0 0.0
    %v1657 = vand.u32 %v994, 4294901760
    %v1658 = vsub.f32 %v994, %v1657
    %v1659 = vand.u32 %v1658, 4294901760
    %1660 = vmatpush1.msra.mxu0 %v1659
    %1661 = vmatprep.subr.mxu0 0.0
    %v1662 = vand.u32 %v995, 4294901760
    %v1663 = vsub.f32 %v995, %v1662
    %v1664 = vand.u32 %v1663, 4294901760
    %1665 = vmatpush1.msra.mxu0 %v1664
    %1666 = vmatprep.subr.mxu0 0.0
    %v1667 = vand.u32 %v996, 4294901760
    %v1668 = vsub.f32 %v996, %v1667
    %v1669 = vand.u32 %v1668, 4294901760
    %1670 = vmatpush1.msra.mxu0 %v1669
    %1671 = vmatprep.subr.mxu0 0.0
    %v1672 = vand.u32 %v997, 4294901760
    %v1673 = vsub.f32 %v997, %v1672
    %v1674 = vand.u32 %v1673, 4294901760
    %1675 = vmatpush1.msra.mxu0 %v1674
    %1676 = vmatprep.subr.mxu0 0.0
    %v1677 = vand.u32 %v998, 4294901760
    %v1678 = vsub.f32 %v998, %v1677
    %v1679 = vand.u32 %v1678, 4294901760
    %1680 = vmatpush1.msra.mxu0 %v1679
    %1681 = vmatprep.subr.mxu0 0.0
    %v1682 = vand.u32 %v999, 4294901760
    %v1683 = vsub.f32 %v999, %v1682
    %v1684 = vand.u32 %v1683, 4294901760
    %1685 = vmatpush1.msra.mxu0 %v1684
    %1686 = vmatprep.subr.mxu0 0.0
    %v1687 = vand.u32 %v1000, 4294901760
    %v1688 = vsub.f32 %v1000, %v1687
    %v1689 = vand.u32 %v1688, 4294901760
    %1690 = vmatpush1.msra.mxu0 %v1689
    %1691 = vmatprep.subr.mxu0 0.0
    %v1692 = vand.u32 %v1001, 4294901760
    %v1693 = vsub.f32 %v1001, %v1692
    %v1694 = vand.u32 %v1693, 4294901760
    %1695 = vmatpush1.msra.mxu0 %v1694
    %1696 = vmatprep.subr.mxu0 0.0
    %v1697 = vand.u32 %v1002, 4294901760
    %v1698 = vsub.f32 %v1002, %v1697
    %v1699 = vand.u32 %v1698, 4294901760
    %1700 = vmatpush1.msra.mxu0 %v1699
    %1701 = vmatprep.subr.mxu0 0.0
    %v1702 = vand.u32 %v1003, 4294901760
    %v1703 = vsub.f32 %v1003, %v1702
    %v1704 = vand.u32 %v1703, 4294901760
    %1705 = vmatpush1.msra.mxu0 %v1704
    %1706 = vmatprep.subr.mxu0 0.0
    %v1707 = vand.u32 %v1004, 4294901760
    %v1708 = vsub.f32 %v1004, %v1707
    %v1709 = vand.u32 %v1708, 4294901760
    %1710 = vmatpush1.msra.mxu0 %v1709
    %1711 = vmatprep.subr.mxu0 0.0
    %v1712 = vand.u32 %v1005, 4294901760
    %v1713 = vsub.f32 %v1005, %v1712
    %v1714 = vand.u32 %v1713, 4294901760
    %1715 = vmatpush1.msra.mxu0 %v1714
    %1716 = vmatprep.subr.mxu0 0.0
    %v1717 = vand.u32 %v1006, 4294901760
    %v1718 = vsub.f32 %v1006, %v1717
    %v1719 = vand.u32 %v1718, 4294901760
    %1720 = vmatpush1.msra.mxu0 %v1719
    %1721 = vmatprep.subr.mxu0 0.0
    %v1722 = vand.u32 %v1007, 4294901760
    %v1723 = vsub.f32 %v1007, %v1722
    %v1724 = vand.u32 %v1723, 4294901760
    %1725 = vmatpush1.msra.mxu0 %v1724
    %1726 = vmatprep.subr.mxu0 0.0
    %v1727 = vand.u32 %v1008, 4294901760
    %v1728 = vsub.f32 %v1008, %v1727
    %v1729 = vand.u32 %v1728, 4294901760
    %1730 = vmatpush1.msra.mxu0 %v1729
    %1731 = vmatprep.subr.mxu0 0.0
    %v1732 = vand.u32 %v1009, 4294901760
    %v1733 = vsub.f32 %v1009, %v1732
    %v1734 = vand.u32 %v1733, 4294901760
    %1735 = vmatpush1.msra.mxu0 %v1734
    %1736 = vmatprep.subr.mxu0 0.0
    %v1737 = vand.u32 %v1010, 4294901760
    %v1738 = vsub.f32 %v1010, %v1737
    %v1739 = vand.u32 %v1738, 4294901760
    %1740 = vmatpush1.msra.mxu0 %v1739
    %1741 = vmatprep.subr.mxu0 0.0
    %v1742 = vand.u32 %v1011, 4294901760
    %v1743 = vsub.f32 %v1011, %v1742
    %v1744 = vand.u32 %v1743, 4294901760
    %1745 = vmatpush1.msra.mxu0 %v1744
    %1746 = vmatprep.subr.mxu0 0.0
    %v1747 = vand.u32 %v1012, 4294901760
    %v1748 = vsub.f32 %v1012, %v1747
    %v1749 = vand.u32 %v1748, 4294901760
    %1750 = vmatpush1.msra.mxu0 %v1749
    %1751 = vmatprep.subr.mxu0 0.0
    %v1752 = vand.u32 %v1013, 4294901760
    %v1753 = vsub.f32 %v1013, %v1752
    %v1754 = vand.u32 %v1753, 4294901760
    %1755 = vmatpush1.msra.mxu0 %v1754
    %1756 = vmatprep.subr.mxu0 0.0
    %v1757 = vand.u32 %v1014, 4294901760
    %v1758 = vsub.f32 %v1014, %v1757
    %v1759 = vand.u32 %v1758, 4294901760
    %1760 = vmatpush1.msra.mxu0 %v1759
    %1761 = vmatprep.subr.mxu0 0.0
    %v1762 = vand.u32 %v1015, 4294901760
    %v1763 = vsub.f32 %v1015, %v1762
    %v1764 = vand.u32 %v1763, 4294901760
    %1765 = vmatpush1.msra.mxu0 %v1764
    %v1766 = vand.u32 %v35, 4294901760
    %1767 = vmatprep.mubr.f32.mxu0 %v1766
    %v1768 = vand.u32 %v34, 4294901760
    %1769 = vmatmul.mubr.f32.gmra.mrb[0].mxu0 %v1768
    %v1770 = vpop.f32.mrb[0].mxu0
    %v1771 = vadd.f32 %v1603, %v1770
    %v1772 = vpop.f32.mrb[0].mxu0
    %1773 = vdwg.mxu0
    %1774 = vmatprep.subr.mxu0 0.0
    %v1775 = vand.u32 %v984, 4294901760
    %1776 = vmatpush1.msra.mxu0 %v1775
    %1777 = vmatprep.subr.mxu0 0.0
    %v1778 = vand.u32 %v985, 4294901760
    %1779 = vmatpush1.msra.mxu0 %v1778
    %1780 = vmatprep.subr.mxu0 0.0
    %v1781 = vand.u32 %v986, 4294901760
    %1782 = vmatpush1.msra.mxu0 %v1781
    %1783 = vmatprep.subr.mxu0 0.0
    %v1784 = vand.u32 %v987, 4294901760
    %1785 = vmatpush1.msra.mxu0 %v1784
    %1786 = vmatprep.subr.mxu0 0.0
    %v1787 = vand.u32 %v988, 4294901760
    %1788 = vmatpush1.msra.mxu0 %v1787
    %1789 = vmatprep.subr.mxu0 0.0
    %v1790 = vand.u32 %v989, 4294901760
    %1791 = vmatpush1.msra.mxu0 %v1790
    %1792 = vmatprep.subr.mxu0 0.0
    %v1793 = vand.u32 %v990, 4294901760
    %1794 = vmatpush1.msra.mxu0 %v1793
    %1795 = vmatprep.subr.mxu0 0.0
    %v1796 = vand.u32 %v991, 4294901760
    %1797 = vmatpush1.msra.mxu0 %v1796
    %1798 = vmatprep.subr.mxu0 0.0
    %v1799 = vand.u32 %v992, 4294901760
    %1800 = vmatpush1.msra.mxu0 %v1799
    %1801 = vmatprep.subr.mxu0 0.0
    %v1802 = vand.u32 %v993, 4294901760
    %1803 = vmatpush1.msra.mxu0 %v1802
    %1804 = vmatprep.subr.mxu0 0.0
    %v1805 = vand.u32 %v994, 4294901760
    %1806 = vmatpush1.msra.mxu0 %v1805
    %1807 = vmatprep.subr.mxu0 0.0
    %v1808 = vand.u32 %v995, 4294901760
    %1809 = vmatpush1.msra.mxu0 %v1808
    %1810 = vmatprep.subr.mxu0 0.0
    %v1811 = vand.u32 %v996, 4294901760
    %1812 = vmatpush1.msra.mxu0 %v1811
    %1813 = vmatprep.subr.mxu0 0.0
    %v1814 = vand.u32 %v997, 4294901760
    %1815 = vmatpush1.msra.mxu0 %v1814
    %1816 = vmatprep.subr.mxu0 0.0
    %v1817 = vand.u32 %v998, 4294901760
    %1818 = vmatpush1.msra.mxu0 %v1817
    %1819 = vmatprep.subr.mxu0 0.0
    %v1820 = vand.u32 %v999, 4294901760
    %1821 = vmatpush1.msra.mxu0 %v1820
    %1822 = vmatprep.subr.mxu0 0.0
    %v1823 = vand.u32 %v1000, 4294901760
    %1824 = vmatpush1.msra.mxu0 %v1823
    %1825 = vmatprep.subr.mxu0 0.0
    %v1826 = vand.u32 %v1001, 4294901760
    %1827 = vmatpush1.msra.mxu0 %v1826
    %1828 = vmatprep.subr.mxu0 0.0
    %v1829 = vand.u32 %v1002, 4294901760
    %1830 = vmatpush1.msra.mxu0 %v1829
    %1831 = vmatprep.subr.mxu0 0.0
    %v1832 = vand.u32 %v1003, 4294901760
    %1833 = vmatpush1.msra.mxu0 %v1832
    %1834 = vmatprep.subr.mxu0 0.0
    %v1835 = vand.u32 %v1004, 4294901760
    %1836 = vmatpush1.msra.mxu0 %v1835
    %1837 = vmatprep.subr.mxu0 0.0
    %v1838 = vand.u32 %v1005, 4294901760
    %1839 = vmatpush1.msra.mxu0 %v1838
    %1840 = vmatprep.subr.mxu0 0.0
    %v1841 = vand.u32 %v1006, 4294901760
    %1842 = vmatpush1.msra.mxu0 %v1841
    %1843 = vmatprep.subr.mxu0 0.0
    %v1844 = vand.u32 %v1007, 4294901760
    %1845 = vmatpush1.msra.mxu0 %v1844
    %1846 = vmatprep.subr.mxu0 0.0
    %v1847 = vand.u32 %v1008, 4294901760
    %1848 = vmatpush1.msra.mxu0 %v1847
    %1849 = vmatprep.subr.mxu0 0.0
    %v1850 = vand.u32 %v1009, 4294901760
    %1851 = vmatpush1.msra.mxu0 %v1850
    %1852 = vmatprep.subr.mxu0 0.0
    %v1853 = vand.u32 %v1010, 4294901760
    %1854 = vmatpush1.msra.mxu0 %v1853
    %1855 = vmatprep.subr.mxu0 0.0
    %v1856 = vand.u32 %v1011, 4294901760
    %1857 = vmatpush1.msra.mxu0 %v1856
    %1858 = vmatprep.subr.mxu0 0.0
    %v1859 = vand.u32 %v1012, 4294901760
    %1860 = vmatpush1.msra.mxu0 %v1859
    %1861 = vmatprep.subr.mxu0 0.0
    %v1862 = vand.u32 %v1013, 4294901760
    %1863 = vmatpush1.msra.mxu0 %v1862
    %1864 = vmatprep.subr.mxu0 0.0
    %v1865 = vand.u32 %v1014, 4294901760
    %1866 = vmatpush1.msra.mxu0 %v1865
    %1867 = vmatprep.subr.mxu0 0.0
    %v1868 = vand.u32 %v1015, 4294901760
    %1869 = vmatpush1.msra.mxu0 %v1868
    %v1870 = vand.u32 %v35, 4294901760
    %1871 = vmatprep.mubr.f32.mxu0 %v1870
    %v1872 = vand.u32 %v34, 4294901760
    %1873 = vmatmul.mubr.f32.gmra.mrb[0].mxu0 %v1872
    %v1874 = vpop.f32.mrb[0].mxu0
    %v1875 = vadd.f32 %v1771, %v1874
    %v1876 = vpop.f32.mrb[0].mxu0
    %1877 = vdwg.mxu0
    %1878 = vmatprep.subr.mxu0 0.0
    %v1879 = vand.u32 %v952, 4294901760
    %1880 = vmatpush1.msra.mxu0 %v1879
    %1881 = vmatprep.subr.mxu0 0.0
    %v1882 = vand.u32 %v953, 4294901760
    %1883 = vmatpush1.msra.mxu0 %v1882
    %1884 = vmatprep.subr.mxu0 0.0
    %v1885 = vand.u32 %v954, 4294901760
    %1886 = vmatpush1.msra.mxu0 %v1885
    %1887 = vmatprep.subr.mxu0 0.0
    %v1888 = vand.u32 %v955, 4294901760
    %1889 = vmatpush1.msra.mxu0 %v1888
    %1890 = vmatprep.subr.mxu0 0.0
    %v1891 = vand.u32 %v956, 4294901760
    %1892 = vmatpush1.msra.mxu0 %v1891
    %1893 = vmatprep.subr.mxu0 0.0
    %v1894 = vand.u32 %v957, 4294901760
    %1895 = vmatpush1.msra.mxu0 %v1894
    %1896 = vmatprep.subr.mxu0 0.0
    %v1897 = vand.u32 %v958, 4294901760
    %1898 = vmatpush1.msra.mxu0 %v1897
    %1899 = vmatprep.subr.mxu0 0.0
    %v1900 = vand.u32 %v959, 4294901760
    %1901 = vmatpush1.msra.mxu0 %v1900
    %1902 = vmatprep.subr.mxu0 0.0
    %v1903 = vand.u32 %v960, 4294901760
    %1904 = vmatpush1.msra.mxu0 %v1903
    %1905 = vmatprep.subr.mxu0 0.0
    %v1906 = vand.u32 %v961, 4294901760
    %1907 = vmatpush1.msra.mxu0 %v1906
    %1908 = vmatprep.subr.mxu0 0.0
    %v1909 = vand.u32 %v962, 4294901760
    %1910 = vmatpush1.msra.mxu0 %v1909
    %1911 = vmatprep.subr.mxu0 0.0
    %v1912 = vand.u32 %v963, 4294901760
    %1913 = vmatpush1.msra.mxu0 %v1912
    %1914 = vmatprep.subr.mxu0 0.0
    %v1915 = vand.u32 %v964, 4294901760
    %1916 = vmatpush1.msra.mxu0 %v1915
    %1917 = vmatprep.subr.mxu0 0.0
    %v1918 = vand.u32 %v965, 4294901760
    %1919 = vmatpush1.msra.mxu0 %v1918
    %1920 = vmatprep.subr.mxu0 0.0
    %v1921 = vand.u32 %v966, 4294901760
    %1922 = vmatpush1.msra.mxu0 %v1921
    %1923 = vmatprep.subr.mxu0 0.0
    %v1924 = vand.u32 %v967, 4294901760
    %1925 = vmatpush1.msra.mxu0 %v1924
    %1926 = vmatprep.subr.mxu0 0.0
    %v1927 = vand.u32 %v968, 4294901760
    %1928 = vmatpush1.msra.mxu0 %v1927
    %1929 = vmatprep.subr.mxu0 0.0
    %v1930 = vand.u32 %v969, 4294901760
    %1931 = vmatpush1.msra.mxu0 %v1930
    %1932 = vmatprep.subr.mxu0 0.0
    %v1933 = vand.u32 %v970, 4294901760
    %1934 = vmatpush1.msra.mxu0 %v1933
    %1935 = vmatprep.subr.mxu0 0.0
    %v1936 = vand.u32 %v971, 4294901760
    %1937 = vmatpush1.msra.mxu0 %v1936
    %1938 = vmatprep.subr.mxu0 0.0
    %v1939 = vand.u32 %v972, 4294901760
    %1940 = vmatpush1.msra.mxu0 %v1939
    %1941 = vmatprep.subr.mxu0 0.0
    %v1942 = vand.u32 %v973, 4294901760
    %1943 = vmatpush1.msra.mxu0 %v1942
    %1944 = vmatprep.subr.mxu0 0.0
    %v1945 = vand.u32 %v974, 4294901760
    %1946 = vmatpush1.msra.mxu0 %v1945
    %1947 = vmatprep.subr.mxu0 0.0
    %v1948 = vand.u32 %v975, 4294901760
    %1949 = vmatpush1.msra.mxu0 %v1948
    %1950 = vmatprep.subr.mxu0 0.0
    %v1951 = vand.u32 %v976, 4294901760
    %1952 = vmatpush1.msra.mxu0 %v1951
    %1953 = vmatprep.subr.mxu0 0.0
    %v1954 = vand.u32 %v977, 4294901760
    %1955 = vmatpush1.msra.mxu0 %v1954
    %1956 = vmatprep.subr.mxu0 0.0
    %v1957 = vand.u32 %v978, 4294901760
    %1958 = vmatpush1.msra.mxu0 %v1957
    %1959 = vmatprep.subr.mxu0 0.0
    %v1960 = vand.u32 %v979, 4294901760
    %1961 = vmatpush1.msra.mxu0 %v1960
    %1962 = vmatprep.subr.mxu0 0.0
    %v1963 = vand.u32 %v980, 4294901760
    %1964 = vmatpush1.msra.mxu0 %v1963
    %1965 = vmatprep.subr.mxu0 0.0
    %v1966 = vand.u32 %v981, 4294901760
    %1967 = vmatpush1.msra.mxu0 %v1966
    %1968 = vmatprep.subr.mxu0 0.0
    %v1969 = vand.u32 %v982, 4294901760
    %1970 = vmatpush1.msra.mxu0 %v1969
    %1971 = vmatprep.subr.mxu0 0.0
    %v1972 = vand.u32 %v983, 4294901760
    %1973 = vmatpush1.msra.mxu0 %v1972
    %v1974 = vand.u32 %v33, 4294901760
    %v1975 = vsub.f32 %v33, %v1974
    %v1976 = vand.u32 %v1975, 4294901760
    %v1977 = vsub.f32 %v1975, %v1976
    %v1978 = vand.u32 %v1977, 4294901760
    %1979 = vmatprep.mubr.f32.mxu0 %v1978
    %v1980 = vand.u32 %v32, 4294901760
    %v1981 = vsub.f32 %v32, %v1980
    %v1982 = vand.u32 %v1981, 4294901760
    %v1983 = vsub.f32 %v1981, %v1982
    %v1984 = vand.u32 %v1983, 4294901760
    %1985 = vmatmul.mubr.f32.gmra.mrb[0].mxu0 %v1984
    %v1986 = vpop.f32.mrb[0].mxu0
    %v1987 = vadd.f32 %v1875, %v1986
    %v1988 = vpop.f32.mrb[0].mxu0
    %1989 = vdwg.mxu0
    %1990 = vmatprep.subr.mxu0 0.0
    %v1991 = vand.u32 %v952, 4294901760
    %v1992 = vsub.f32 %v952, %v1991
    %v1993 = vand.u32 %v1992, 4294901760
    %v1994 = vsub.f32 %v1992, %v1993
    %v1995 = vand.u32 %v1994, 4294901760
    %1996 = vmatpush1.msra.mxu0 %v1995
    %1997 = vmatprep.subr.mxu0 0.0
    %v1998 = vand.u32 %v953, 4294901760
    %v1999 = vsub.f32 %v953, %v1998
    %v2000 = vand.u32 %v1999, 4294901760
    %v2001 = vsub.f32 %v1999, %v2000
    %v2002 = vand.u32 %v2001, 4294901760
    %2003 = vmatpush1.msra.mxu0 %v2002
    %2004 = vmatprep.subr.mxu0 0.0
    %v2005 = vand.u32 %v954, 4294901760
    %v2006 = vsub.f32 %v954, %v2005
    %v2007 = vand.u32 %v2006, 4294901760
    %v2008 = vsub.f32 %v2006, %v2007
    %v2009 = vand.u32 %v2008, 4294901760
    %2010 = vmatpush1.msra.mxu0 %v2009
    %2011 = vmatprep.subr.mxu0 0.0
    %v2012 = vand.u32 %v955, 4294901760
    %v2013 = vsub.f32 %v955, %v2012
    %v2014 = vand.u32 %v2013, 4294901760
    %v2015 = vsub.f32 %v2013, %v2014
    %v2016 = vand.u32 %v2015, 4294901760
    %2017 = vmatpush1.msra.mxu0 %v2016
    %2018 = vmatprep.subr.mxu0 0.0
    %v2019 = vand.u32 %v956, 4294901760
    %v2020 = vsub.f32 %v956, %v2019
    %v2021 = vand.u32 %v2020, 4294901760
    %v2022 = vsub.f32 %v2020, %v2021
    %v2023 = vand.u32 %v2022, 4294901760
    %2024 = vmatpush1.msra.mxu0 %v2023
    %2025 = vmatprep.subr.mxu0 0.0
    %v2026 = vand.u32 %v957, 4294901760
    %v2027 = vsub.f32 %v957, %v2026
    %v2028 = vand.u32 %v2027, 4294901760
    %v2029 = vsub.f32 %v2027, %v2028
    %v2030 = vand.u32 %v2029, 4294901760
    %2031 = vmatpush1.msra.mxu0 %v2030
    %2032 = vmatprep.subr.mxu0 0.0
    %v2033 = vand.u32 %v958, 4294901760
    %v2034 = vsub.f32 %v958, %v2033
    %v2035 = vand.u32 %v2034, 4294901760
    %v2036 = vsub.f32 %v2034, %v2035
    %v2037 = vand.u32 %v2036, 4294901760
    %2038 = vmatpush1.msra.mxu0 %v2037
    %2039 = vmatprep.subr.mxu0 0.0
    %v2040 = vand.u32 %v959, 4294901760
    %v2041 = vsub.f32 %v959, %v2040
    %v2042 = vand.u32 %v2041, 4294901760
    %v2043 = vsub.f32 %v2041, %v2042
    %v2044 = vand.u32 %v2043, 4294901760
    %2045 = vmatpush1.msra.mxu0 %v2044
    %2046 = vmatprep.subr.mxu0 0.0
    %v2047 = vand.u32 %v960, 4294901760
    %v2048 = vsub.f32 %v960, %v2047
    %v2049 = vand.u32 %v2048, 4294901760
    %v2050 = vsub.f32 %v2048, %v2049
    %v2051 = vand.u32 %v2050, 4294901760
    %2052 = vmatpush1.msra.mxu0 %v2051
    %2053 = vmatprep.subr.mxu0 0.0
    %v2054 = vand.u32 %v961, 4294901760
    %v2055 = vsub.f32 %v961, %v2054
    %v2056 = vand.u32 %v2055, 4294901760
    %v2057 = vsub.f32 %v2055, %v2056
    %v2058 = vand.u32 %v2057, 4294901760
    %2059 = vmatpush1.msra.mxu0 %v2058
    %2060 = vmatprep.subr.mxu0 0.0
    %v2061 = vand.u32 %v962, 4294901760
    %v2062 = vsub.f32 %v962, %v2061
    %v2063 = vand.u32 %v2062, 4294901760
    %v2064 = vsub.f32 %v2062, %v2063
    %v2065 = vand.u32 %v2064, 4294901760
    %2066 = vmatpush1.msra.mxu0 %v2065
    %2067 = vmatprep.subr.mxu0 0.0
    %v2068 = vand.u32 %v963, 4294901760
    %v2069 = vsub.f32 %v963, %v2068
    %v2070 = vand.u32 %v2069, 4294901760
    %v2071 = vsub.f32 %v2069, %v2070
    %v2072 = vand.u32 %v2071, 4294901760
    %2073 = vmatpush1.msra.mxu0 %v2072
    %2074 = vmatprep.subr.mxu0 0.0
    %v2075 = vand.u32 %v964, 4294901760
    %v2076 = vsub.f32 %v964, %v2075
    %v2077 = vand.u32 %v2076, 4294901760
    %v2078 = vsub.f32 %v2076, %v2077
    %v2079 = vand.u32 %v2078, 4294901760
    %2080 = vmatpush1.msra.mxu0 %v2079
    %2081 = vmatprep.subr.mxu0 0.0
    %v2082 = vand.u32 %v965, 4294901760
    %v2083 = vsub.f32 %v965, %v2082
    %v2084 = vand.u32 %v2083, 4294901760
    %v2085 = vsub.f32 %v2083, %v2084
    %v2086 = vand.u32 %v2085, 4294901760
    %2087 = vmatpush1.msra.mxu0 %v2086
    %2088 = vmatprep.subr.mxu0 0.0
    %v2089 = vand.u32 %v966, 4294901760
    %v2090 = vsub.f32 %v966, %v2089
    %v2091 = vand.u32 %v2090, 4294901760
    %v2092 = vsub.f32 %v2090, %v2091
    %v2093 = vand.u32 %v2092, 4294901760
    %2094 = vmatpush1.msra.mxu0 %v2093
    %2095 = vmatprep.subr.mxu0 0.0
    %v2096 = vand.u32 %v967, 4294901760
    %v2097 = vsub.f32 %v967, %v2096
    %v2098 = vand.u32 %v2097, 4294901760
    %v2099 = vsub.f32 %v2097, %v2098
    %v2100 = vand.u32 %v2099, 4294901760
    %2101 = vmatpush1.msra.mxu0 %v2100
    %2102 = vmatprep.subr.mxu0 0.0
    %v2103 = vand.u32 %v968, 4294901760
    %v2104 = vsub.f32 %v968, %v2103
    %v2105 = vand.u32 %v2104, 4294901760
    %v2106 = vsub.f32 %v2104, %v2105
    %v2107 = vand.u32 %v2106, 4294901760
    %2108 = vmatpush1.msra.mxu0 %v2107
    %2109 = vmatprep.subr.mxu0 0.0
    %v2110 = vand.u32 %v969, 4294901760
    %v2111 = vsub.f32 %v969, %v2110
    %v2112 = vand.u32 %v2111, 4294901760
    %v2113 = vsub.f32 %v2111, %v2112
    %v2114 = vand.u32 %v2113, 4294901760
    %2115 = vmatpush1.msra.mxu0 %v2114
    %2116 = vmatprep.subr.mxu0 0.0
    %v2117 = vand.u32 %v970, 4294901760
    %v2118 = vsub.f32 %v970, %v2117
    %v2119 = vand.u32 %v2118, 4294901760
    %v2120 = vsub.f32 %v2118, %v2119
    %v2121 = vand.u32 %v2120, 4294901760
    %2122 = vmatpush1.msra.mxu0 %v2121
    %2123 = vmatprep.subr.mxu0 0.0
    %v2124 = vand.u32 %v971, 4294901760
    %v2125 = vsub.f32 %v971, %v2124
    %v2126 = vand.u32 %v2125, 4294901760
    %v2127 = vsub.f32 %v2125, %v2126
    %v2128 = vand.u32 %v2127, 4294901760
    %2129 = vmatpush1.msra.mxu0 %v2128
    %2130 = vmatprep.subr.mxu0 0.0
    %v2131 = vand.u32 %v972, 4294901760
    %v2132 = vsub.f32 %v972, %v2131
    %v2133 = vand.u32 %v2132, 4294901760
    %v2134 = vsub.f32 %v2132, %v2133
    %v2135 = vand.u32 %v2134, 4294901760
    %2136 = vmatpush1.msra.mxu0 %v2135
    %2137 = vmatprep.subr.mxu0 0.0
    %v2138 = vand.u32 %v973, 4294901760
    %v2139 = vsub.f32 %v973, %v2138
    %v2140 = vand.u32 %v2139, 4294901760
    %v2141 = vsub.f32 %v2139, %v2140
    %v2142 = vand.u32 %v2141, 4294901760
    %2143 = vmatpush1.msra.mxu0 %v2142
    %2144 = vmatprep.subr.mxu0 0.0
    %v2145 = vand.u32 %v974, 4294901760
    %v2146 = vsub.f32 %v974, %v2145
    %v2147 = vand.u32 %v2146, 4294901760
    %v2148 = vsub.f32 %v2146, %v2147
    %v2149 = vand.u32 %v2148, 4294901760
    %2150 = vmatpush1.msra.mxu0 %v2149
    %2151 = vmatprep.subr.mxu0 0.0
    %v2152 = vand.u32 %v975, 4294901760
    %v2153 = vsub.f32 %v975, %v2152
    %v2154 = vand.u32 %v2153, 4294901760
    %v2155 = vsub.f32 %v2153, %v2154
    %v2156 = vand.u32 %v2155, 4294901760
    %2157 = vmatpush1.msra.mxu0 %v2156
    %2158 = vmatprep.subr.mxu0 0.0
    %v2159 = vand.u32 %v976, 4294901760
    %v2160 = vsub.f32 %v976, %v2159
    %v2161 = vand.u32 %v2160, 4294901760
    %v2162 = vsub.f32 %v2160, %v2161
    %v2163 = vand.u32 %v2162, 4294901760
    %2164 = vmatpush1.msra.mxu0 %v2163
    %2165 = vmatprep.subr.mxu0 0.0
    %v2166 = vand.u32 %v977, 4294901760
    %v2167 = vsub.f32 %v977, %v2166
    %v2168 = vand.u32 %v2167, 4294901760
    %v2169 = vsub.f32 %v2167, %v2168
    %v2170 = vand.u32 %v2169, 4294901760
    %2171 = vmatpush1.msra.mxu0 %v2170
    %2172 = vmatprep.subr.mxu0 0.0
    %v2173 = vand.u32 %v978, 4294901760
    %v2174 = vsub.f32 %v978, %v2173
    %v2175 = vand.u32 %v2174, 4294901760
    %v2176 = vsub.f32 %v2174, %v2175
    %v2177 = vand.u32 %v2176, 4294901760
    %2178 = vmatpush1.msra.mxu0 %v2177
    %2179 = vmatprep.subr.mxu0 0.0
    %v2180 = vand.u32 %v979, 4294901760
    %v2181 = vsub.f32 %v979, %v2180
    %v2182 = vand.u32 %v2181, 4294901760
    %v2183 = vsub.f32 %v2181, %v2182
    %v2184 = vand.u32 %v2183, 4294901760
    %2185 = vmatpush1.msra.mxu0 %v2184
    %2186 = vmatprep.subr.mxu0 0.0
    %v2187 = vand.u32 %v980, 4294901760
    %v2188 = vsub.f32 %v980, %v2187
    %v2189 = vand.u32 %v2188, 4294901760
    %v2190 = vsub.f32 %v2188, %v2189
    %v2191 = vand.u32 %v2190, 4294901760
    %2192 = vmatpush1.msra.mxu0 %v2191
    %2193 = vmatprep.subr.mxu0 0.0
    %v2194 = vand.u32 %v981, 4294901760
    %v2195 = vsub.f32 %v981, %v2194
    %v2196 = vand.u32 %v2195, 4294901760
    %v2197 = vsub.f32 %v2195, %v2196
    %v2198 = vand.u32 %v2197, 4294901760
    %2199 = vmatpush1.msra.mxu0 %v2198
    %2200 = vmatprep.subr.mxu0 0.0
    %v2201 = vand.u32 %v982, 4294901760
    %v2202 = vsub.f32 %v982, %v2201
    %v2203 = vand.u32 %v2202, 4294901760
    %v2204 = vsub.f32 %v2202, %v2203
    %v2205 = vand.u32 %v2204, 4294901760
    %2206 = vmatpush1.msra.mxu0 %v2205
    %2207 = vmatprep.subr.mxu0 0.0
    %v2208 = vand.u32 %v983, 4294901760
    %v2209 = vsub.f32 %v983, %v2208
    %v2210 = vand.u32 %v2209, 4294901760
    %v2211 = vsub.f32 %v2209, %v2210
    %v2212 = vand.u32 %v2211, 4294901760
    %2213 = vmatpush1.msra.mxu0 %v2212
    %v2214 = vand.u32 %v33, 4294901760
    %2215 = vmatprep.mubr.f32.mxu0 %v2214
    %v2216 = vand.u32 %v32, 4294901760
    %2217 = vmatmul.mubr.f32.gmra.mrb[0].mxu0 %v2216
    %v2218 = vpop.f32.mrb[0].mxu0
    %v2219 = vadd.f32 %v1987, %v2218
    %v2220 = vpop.f32.mrb[0].mxu0
    %2221 = vdwg.mxu0
    %2222 = vmatprep.subr.mxu0 0.0
    %v2223 = vand.u32 %v952, 4294901760
    %v2224 = vsub.f32 %v952, %v2223
    %2225 = vmatpush1.msra.mxu0 %v2224
    %2226 = vmatprep.subr.mxu0 0.0
    %v2227 = vand.u32 %v953, 4294901760
    %v2228 = vsub.f32 %v953, %v2227
    %2229 = vmatpush1.msra.mxu0 %v2228
    %2230 = vmatprep.subr.mxu0 0.0
    %v2231 = vand.u32 %v954, 4294901760
    %v2232 = vsub.f32 %v954, %v2231
    %2233 = vmatpush1.msra.mxu0 %v2232
    %2234 = vmatprep.subr.mxu0 0.0
    %v2235 = vand.u32 %v955, 4294901760
    %v2236 = vsub.f32 %v955, %v2235
    %2237 = vmatpush1.msra.mxu0 %v2236
    %2238 = vmatprep.subr.mxu0 0.0
    %v2239 = vand.u32 %v956, 4294901760
    %v2240 = vsub.f32 %v956, %v2239
    %2241 = vmatpush1.msra.mxu0 %v2240
    %2242 = vmatprep.subr.mxu0 0.0
    %v2243 = vand.u32 %v957, 4294901760
    %v2244 = vsub.f32 %v957, %v2243
    %2245 = vmatpush1.msra.mxu0 %v2244
    %2246 = vmatprep.subr.mxu0 0.0
    %v2247 = vand.u32 %v958, 4294901760
    %v2248 = vsub.f32 %v958, %v2247
    %2249 = vmatpush1.msra.mxu0 %v2248
    %2250 = vmatprep.subr.mxu0 0.0
    %v2251 = vand.u32 %v959, 4294901760
    %v2252 = vsub.f32 %v959, %v2251
    %2253 = vmatpush1.msra.mxu0 %v2252
    %2254 = vmatprep.subr.mxu0 0.0
    %v2255 = vand.u32 %v960, 4294901760
    %v2256 = vsub.f32 %v960, %v2255
    %2257 = vmatpush1.msra.mxu0 %v2256
    %2258 = vmatprep.subr.mxu0 0.0
    %v2259 = vand.u32 %v961, 4294901760
    %v2260 = vsub.f32 %v961, %v2259
    %2261 = vmatpush1.msra.mxu0 %v2260
    %2262 = vmatprep.subr.mxu0 0.0
    %v2263 = vand.u32 %v962, 4294901760
    %v2264 = vsub.f32 %v962, %v2263
    %2265 = vmatpush1.msra.mxu0 %v2264
    %2266 = vmatprep.subr.mxu0 0.0
    %v2267 = vand.u32 %v963, 4294901760
    %v2268 = vsub.f32 %v963, %v2267
    %2269 = vmatpush1.msra.mxu0 %v2268
    %2270 = vmatprep.subr.mxu0 0.0
    %v2271 = vand.u32 %v964, 4294901760
    %v2272 = vsub.f32 %v964, %v2271
    %2273 = vmatpush1.msra.mxu0 %v2272
    %2274 = vmatprep.subr.mxu0 0.0
    %v2275 = vand.u32 %v965, 4294901760
    %v2276 = vsub.f32 %v965, %v2275
    %2277 = vmatpush1.msra.mxu0 %v2276
    %2278 = vmatprep.subr.mxu0 0.0
    %v2279 = vand.u32 %v966, 4294901760
    %v2280 = vsub.f32 %v966, %v2279
    %2281 = vmatpush1.msra.mxu0 %v2280
    %2282 = vmatprep.subr.mxu0 0.0
    %v2283 = vand.u32 %v967, 4294901760
    %v2284 = vsub.f32 %v967, %v2283
    %2285 = vmatpush1.msra.mxu0 %v2284
    %2286 = vmatprep.subr.mxu0 0.0
    %v2287 = vand.u32 %v968, 4294901760
    %v2288 = vsub.f32 %v968, %v2287
    %2289 = vmatpush1.msra.mxu0 %v2288
    %2290 = vmatprep.subr.mxu0 0.0
    %v2291 = vand.u32 %v969, 4294901760
    %v2292 = vsub.f32 %v969, %v2291
    %2293 = vmatpush1.msra.mxu0 %v2292
    %2294 = vmatprep.subr.mxu0 0.0
    %v2295 = vand.u32 %v970, 4294901760
    %v2296 = vsub.f32 %v970, %v2295
    %2297 = vmatpush1.msra.mxu0 %v2296
    %2298 = vmatprep.subr.mxu0 0.0
    %v2299 = vand.u32 %v971, 4294901760
    %v2300 = vsub.f32 %v971, %v2299
    %2301 = vmatpush1.msra.mxu0 %v2300
    %2302 = vmatprep.subr.mxu0 0.0
    %v2303 = vand.u32 %v972, 4294901760
    %v2304 = vsub.f32 %v972, %v2303
    %2305 = vmatpush1.msra.mxu0 %v2304
    %2306 = vmatprep.subr.mxu0 0.0
    %v2307 = vand.u32 %v973, 4294901760
    %v2308 = vsub.f32 %v973, %v2307
    %2309 = vmatpush1.msra.mxu0 %v2308
    %2310 = vmatprep.subr.mxu0 0.0
    %v2311 = vand.u32 %v974, 4294901760
    %v2312 = vsub.f32 %v974, %v2311
    %2313 = vmatpush1.msra.mxu0 %v2312
    %2314 = vmatprep.subr.mxu0 0.0
    %v2315 = vand.u32 %v975, 4294901760
    %v2316 = vsub.f32 %v975, %v2315
    %2317 = vmatpush1.msra.mxu0 %v2316
    %2318 = vmatprep.subr.mxu0 0.0
    %v2319 = vand.u32 %v976, 4294901760
    %v2320 = vsub.f32 %v976, %v2319
    %2321 = vmatpush1.msra.mxu0 %v2320
    %2322 = vmatprep.subr.mxu0 0.0
    %v2323 = vand.u32 %v977, 4294901760
    %v2324 = vsub.f32 %v977, %v2323
    %2325 = vmatpush1.msra.mxu0 %v2324
    %2326 = vmatprep.subr.mxu0 0.0
    %v2327 = vand.u32 %v978, 4294901760
    %v2328 = vsub.f32 %v978, %v2327
    %2329 = vmatpush1.msra.mxu0 %v2328
    %2330 = vmatprep.subr.mxu0 0.0
    %v2331 = vand.u32 %v979, 4294901760
    %v2332 = vsub.f32 %v979, %v2331
    %2333 = vmatpush1.msra.mxu0 %v2332
    %2334 = vmatprep.subr.mxu0 0.0
    %v2335 = vand.u32 %v980, 4294901760
    %v2336 = vsub.f32 %v980, %v2335
    %2337 = vmatpush1.msra.mxu0 %v2336
    %2338 = vmatprep.subr.mxu0 0.0
    %v2339 = vand.u32 %v981, 4294901760
    %v2340 = vsub.f32 %v981, %v2339
    %2341 = vmatpush1.msra.mxu0 %v2340
    %2342 = vmatprep.subr.mxu0 0.0
    %v2343 = vand.u32 %v982, 4294901760
    %v2344 = vsub.f32 %v982, %v2343
    %2345 = vmatpush1.msra.mxu0 %v2344
    %2346 = vmatprep.subr.mxu0 0.0
    %v2347 = vand.u32 %v983, 4294901760
    %v2348 = vsub.f32 %v983, %v2347
    %2349 = vmatpush1.msra.mxu0 %v2348
    %v2350 = vand.u32 %v33, 4294901760
    %v2351 = vsub.f32 %v33, %v2350
    %2352 = vmatprep.mubr.f32.mxu0 %v2351
    %v2353 = vand.u32 %v32, 4294901760
    %v2354 = vsub.f32 %v32, %v2353
    %2355 = vmatmul.mubr.f32.gmra.mrb[0].mxu0 %v2354
    %v2356 = vpop.f32.mrb[0].mxu0
    %v2357 = vadd.f32 %v2219, %v2356
    %v2358 = vpop.f32.mrb[0].mxu0
    %2359 = vdwg.mxu0
    %2360 = vmatprep.subr.mxu0 0.0
    %v2361 = vand.u32 %v952, 4294901760
    %2362 = vmatpush1.msra.mxu0 %v2361
    %2363 = vmatprep.subr.mxu0 0.0
    %v2364 = vand.u32 %v953, 4294901760
    %2365 = vmatpush1.msra.mxu0 %v2364
    %2366 = vmatprep.subr.mxu0 0.0
    %v2367 = vand.u32 %v954, 4294901760
    %2368 = vmatpush1.msra.mxu0 %v2367
    %2369 = vmatprep.subr.mxu0 0.0
    %v2370 = vand.u32 %v955, 4294901760
    %2371 = vmatpush1.msra.mxu0 %v2370
    %2372 = vmatprep.subr.mxu0 0.0
    %v2373 = vand.u32 %v956, 4294901760
    %2374 = vmatpush1.msra.mxu0 %v2373
    %2375 = vmatprep.subr.mxu0 0.0
    %v2376 = vand.u32 %v957, 4294901760
    %2377 = vmatpush1.msra.mxu0 %v2376
    %2378 = vmatprep.subr.mxu0 0.0
    %v2379 = vand.u32 %v958, 4294901760
    %2380 = vmatpush1.msra.mxu0 %v2379
    %2381 = vmatprep.subr.mxu0 0.0
    %v2382 = vand.u32 %v959, 4294901760
    %2383 = vmatpush1.msra.mxu0 %v2382
    %2384 = vmatprep.subr.mxu0 0.0
    %v2385 = vand.u32 %v960, 4294901760
    %2386 = vmatpush1.msra.mxu0 %v2385
    %2387 = vmatprep.subr.mxu0 0.0
    %v2388 = vand.u32 %v961, 4294901760
    %2389 = vmatpush1.msra.mxu0 %v2388
    %2390 = vmatprep.subr.mxu0 0.0
    %v2391 = vand.u32 %v962, 4294901760
    %2392 = vmatpush1.msra.mxu0 %v2391
    %2393 = vmatprep.subr.mxu0 0.0
    %v2394 = vand.u32 %v963, 4294901760
    %2395 = vmatpush1.msra.mxu0 %v2394
    %2396 = vmatprep.subr.mxu0 0.0
    %v2397 = vand.u32 %v964, 4294901760
    %2398 = vmatpush1.msra.mxu0 %v2397
    %2399 = vmatprep.subr.mxu0 0.0
    %v2400 = vand.u32 %v965, 4294901760
    %2401 = vmatpush1.msra.mxu0 %v2400
    %2402 = vmatprep.subr.mxu0 0.0
    %v2403 = vand.u32 %v966, 4294901760
    %2404 = vmatpush1.msra.mxu0 %v2403
    %2405 = vmatprep.subr.mxu0 0.0
    %v2406 = vand.u32 %v967, 4294901760
    %2407 = vmatpush1.msra.mxu0 %v2406
    %2408 = vmatprep.subr.mxu0 0.0
    %v2409 = vand.u32 %v968, 4294901760
    %2410 = vmatpush1.msra.mxu0 %v2409
    %2411 = vmatprep.subr.mxu0 0.0
    %v2412 = vand.u32 %v969, 4294901760
    %2413 = vmatpush1.msra.mxu0 %v2412
    %2414 = vmatprep.subr.mxu0 0.0
    %v2415 = vand.u32 %v970, 4294901760
    %2416 = vmatpush1.msra.mxu0 %v2415
    %2417 = vmatprep.subr.mxu0 0.0
    %v2418 = vand.u32 %v971, 4294901760
    %2419 = vmatpush1.msra.mxu0 %v2418
    %2420 = vmatprep.subr.mxu0 0.0
    %v2421 = vand.u32 %v972, 4294901760
    %2422 = vmatpush1.msra.mxu0 %v2421
    %2423 = vmatprep.subr.mxu0 0.0
    %v2424 = vand.u32 %v973, 4294901760
    %2425 = vmatpush1.msra.mxu0 %v2424
    %2426 = vmatprep.subr.mxu0 0.0
    %v2427 = vand.u32 %v974, 4294901760
    %2428 = vmatpush1.msra.mxu0 %v2427
    %2429 = vmatprep.subr.mxu0 0.0
    %v2430 = vand.u32 %v975, 4294901760
    %2431 = vmatpush1.msra.mxu0 %v2430
    %2432 = vmatprep.subr.mxu0 0.0
    %v2433 = vand.u32 %v976, 4294901760
    %2434 = vmatpush1.msra.mxu0 %v2433
    %2435 = vmatprep.subr.mxu0 0.0
    %v2436 = vand.u32 %v977, 4294901760
    %2437 = vmatpush1.msra.mxu0 %v2436
    %2438 = vmatprep.subr.mxu0 0.0
    %v2439 = vand.u32 %v978, 4294901760
    %2440 = vmatpush1.msra.mxu0 %v2439
    %2441 = vmatprep.subr.mxu0 0.0
    %v2442 = vand.u32 %v979, 4294901760
    %2443 = vmatpush1.msra.mxu0 %v2442
    %2444 = vmatprep.subr.mxu0 0.0
    %v2445 = vand.u32 %v980, 4294901760
    %2446 = vmatpush1.msra.mxu0 %v2445
    %2447 = vmatprep.subr.mxu0 0.0
    %v2448 = vand.u32 %v981, 4294901760
    %2449 = vmatpush1.msra.mxu0 %v2448
    %2450 = vmatprep.subr.mxu0 0.0
    %v2451 = vand.u32 %v982, 4294901760
    %2452 = vmatpush1.msra.mxu0 %v2451
    %2453 = vmatprep.subr.mxu0 0.0
    %v2454 = vand.u32 %v983, 4294901760
    %2455 = vmatpush1.msra.mxu0 %v2454
    %v2456 = vand.u32 %v33, 4294901760
    %v2457 = vsub.f32 %v33, %v2456
    %v2458 = vand.u32 %v2457, 4294901760
    %2459 = vmatprep.mubr.f32.mxu0 %v2458
    %v2460 = vand.u32 %v32, 4294901760
    %v2461 = vsub.f32 %v32, %v2460
    %v2462 = vand.u32 %v2461, 4294901760
    %2463 = vmatmul.mubr.f32.gmra.mrb[0].mxu0 %v2462
    %v2464 = vpop.f32.mrb[0].mxu0
    %v2465 = vadd.f32 %v2357, %v2464
    %v2466 = vpop.f32.mrb[0].mxu0
    %2467 = vdwg.mxu0
    %2468 = vmatprep.subr.mxu0 0.0
    %v2469 = vand.u32 %v952, 4294901760
    %v2470 = vsub.f32 %v952, %v2469
    %v2471 = vand.u32 %v2470, 4294901760
    %2472 = vmatpush1.msra.mxu0 %v2471
    %2473 = vmatprep.subr.mxu0 0.0
    %v2474 = vand.u32 %v953, 4294901760
    %v2475 = vsub.f32 %v953, %v2474
    %v2476 = vand.u32 %v2475, 4294901760
    %2477 = vmatpush1.msra.mxu0 %v2476
    %2478 = vmatprep.subr.mxu0 0.0
    %v2479 = vand.u32 %v954, 4294901760
    %v2480 = vsub.f32 %v954, %v2479
    %v2481 = vand.u32 %v2480, 4294901760
    %2482 = vmatpush1.msra.mxu0 %v2481
    %2483 = vmatprep.subr.mxu0 0.0
    %v2484 = vand.u32 %v955, 4294901760
    %v2485 = vsub.f32 %v955, %v2484
    %v2486 = vand.u32 %v2485, 4294901760
    %2487 = vmatpush1.msra.mxu0 %v2486
    %2488 = vmatprep.subr.mxu0 0.0
    %v2489 = vand.u32 %v956, 4294901760
    %v2490 = vsub.f32 %v956, %v2489
    %v2491 = vand.u32 %v2490, 4294901760
    %2492 = vmatpush1.msra.mxu0 %v2491
    %2493 = vmatprep.subr.mxu0 0.0
    %v2494 = vand.u32 %v957, 4294901760
    %v2495 = vsub.f32 %v957, %v2494
    %v2496 = vand.u32 %v2495, 4294901760
    %2497 = vmatpush1.msra.mxu0 %v2496
    %2498 = vmatprep.subr.mxu0 0.0
    %v2499 = vand.u32 %v958, 4294901760
    %v2500 = vsub.f32 %v958, %v2499
    %v2501 = vand.u32 %v2500, 4294901760
    %2502 = vmatpush1.msra.mxu0 %v2501
    %2503 = vmatprep.subr.mxu0 0.0
    %v2504 = vand.u32 %v959, 4294901760
    %v2505 = vsub.f32 %v959, %v2504
    %v2506 = vand.u32 %v2505, 4294901760
    %2507 = vmatpush1.msra.mxu0 %v2506
    %2508 = vmatprep.subr.mxu0 0.0
    %v2509 = vand.u32 %v960, 4294901760
    %v2510 = vsub.f32 %v960, %v2509
    %v2511 = vand.u32 %v2510, 4294901760
    %2512 = vmatpush1.msra.mxu0 %v2511
    %2513 = vmatprep.subr.mxu0 0.0
    %v2514 = vand.u32 %v961, 4294901760
    %v2515 = vsub.f32 %v961, %v2514
    %v2516 = vand.u32 %v2515, 4294901760
    %2517 = vmatpush1.msra.mxu0 %v2516
    %2518 = vmatprep.subr.mxu0 0.0
    %v2519 = vand.u32 %v962, 4294901760
    %v2520 = vsub.f32 %v962, %v2519
    %v2521 = vand.u32 %v2520, 4294901760
    %2522 = vmatpush1.msra.mxu0 %v2521
    %2523 = vmatprep.subr.mxu0 0.0
    %v2524 = vand.u32 %v963, 4294901760
    %v2525 = vsub.f32 %v963, %v2524
    %v2526 = vand.u32 %v2525, 4294901760
    %2527 = vmatpush1.msra.mxu0 %v2526
    %2528 = vmatprep.subr.mxu0 0.0
    %v2529 = vand.u32 %v964, 4294901760
    %v2530 = vsub.f32 %v964, %v2529
    %v2531 = vand.u32 %v2530, 4294901760
    %2532 = vmatpush1.msra.mxu0 %v2531
    %2533 = vmatprep.subr.mxu0 0.0
    %v2534 = vand.u32 %v965, 4294901760
    %v2535 = vsub.f32 %v965, %v2534
    %v2536 = vand.u32 %v2535, 4294901760
    %2537 = vmatpush1.msra.mxu0 %v2536
    %2538 = vmatprep.subr.mxu0 0.0
    %v2539 = vand.u32 %v966, 4294901760
    %v2540 = vsub.f32 %v966, %v2539
    %v2541 = vand.u32 %v2540, 4294901760
    %2542 = vmatpush1.msra.mxu0 %v2541
    %2543 = vmatprep.subr.mxu0 0.0
    %v2544 = vand.u32 %v967, 4294901760
    %v2545 = vsub.f32 %v967, %v2544
    %v2546 = vand.u32 %v2545, 4294901760
    %2547 = vmatpush1.msra.mxu0 %v2546
    %2548 = vmatprep.subr.mxu0 0.0
    %v2549 = vand.u32 %v968, 4294901760
    %v2550 = vsub.f32 %v968, %v2549
    %v2551 = vand.u32 %v2550, 4294901760
    %2552 = vmatpush1.msra.mxu0 %v2551
    %2553 = vmatprep.subr.mxu0 0.0
    %v2554 = vand.u32 %v969, 4294901760
    %v2555 = vsub.f32 %v969, %v2554
    %v2556 = vand.u32 %v2555, 4294901760
    %2557 = vmatpush1.msra.mxu0 %v2556
    %2558 = vmatprep.subr.mxu0 0.0
    %v2559 = vand.u32 %v970, 4294901760
    %v2560 = vsub.f32 %v970, %v2559
    %v2561 = vand.u32 %v2560, 4294901760
    %2562 = vmatpush1.msra.mxu0 %v2561
    %2563 = vmatprep.subr.mxu0 0.0
    %v2564 = vand.u32 %v971, 4294901760
    %v2565 = vsub.f32 %v971, %v2564
    %v2566 = vand.u32 %v2565, 4294901760
    %2567 = vmatpush1.msra.mxu0 %v2566
    %2568 = vmatprep.subr.mxu0 0.0
    %v2569 = vand.u32 %v972, 4294901760
    %v2570 = vsub.f32 %v972, %v2569
    %v2571 = vand.u32 %v2570, 4294901760
    %2572 = vmatpush1.msra.mxu0 %v2571
    %2573 = vmatprep.subr.mxu0 0.0
    %v2574 = vand.u32 %v973, 4294901760
    %v2575 = vsub.f32 %v973, %v2574
    %v2576 = vand.u32 %v2575, 4294901760
    %2577 = vmatpush1.msra.mxu0 %v2576
    %2578 = vmatprep.subr.mxu0 0.0
    %v2579 = vand.u32 %v974, 4294901760
    %v2580 = vsub.f32 %v974, %v2579
    %v2581 = vand.u32 %v2580, 4294901760
    %2582 = vmatpush1.msra.mxu0 %v2581
    %2583 = vmatprep.subr.mxu0 0.0
    %v2584 = vand.u32 %v975, 4294901760
    %v2585 = vsub.f32 %v975, %v2584
    %v2586 = vand.u32 %v2585, 4294901760
    %2587 = vmatpush1.msra.mxu0 %v2586
    %2588 = vmatprep.subr.mxu0 0.0
    %v2589 = vand.u32 %v976, 4294901760
    %v2590 = vsub.f32 %v976, %v2589
    %v2591 = vand.u32 %v2590, 4294901760
    %2592 = vmatpush1.msra.mxu0 %v2591
    %2593 = vmatprep.subr.mxu0 0.0
    %v2594 = vand.u32 %v977, 4294901760
    %v2595 = vsub.f32 %v977, %v2594
    %v2596 = vand.u32 %v2595, 4294901760
    %2597 = vmatpush1.msra.mxu0 %v2596
    %2598 = vmatprep.subr.mxu0 0.0
    %v2599 = vand.u32 %v978, 4294901760
    %v2600 = vsub.f32 %v978, %v2599
    %v2601 = vand.u32 %v2600, 4294901760
    %2602 = vmatpush1.msra.mxu0 %v2601
    %2603 = vmatprep.subr.mxu0 0.0
    %v2604 = vand.u32 %v979, 4294901760
    %v2605 = vsub.f32 %v979, %v2604
    %v2606 = vand.u32 %v2605, 4294901760
    %2607 = vmatpush1.msra.mxu0 %v2606
    %2608 = vmatprep.subr.mxu0 0.0
    %v2609 = vand.u32 %v980, 4294901760
    %v2610 = vsub.f32 %v980, %v2609
    %v2611 = vand.u32 %v2610, 4294901760
    %2612 = vmatpush1.msra.mxu0 %v2611
    %2613 = vmatprep.subr.mxu0 0.0
    %v2614 = vand.u32 %v981, 4294901760
    %v2615 = vsub.f32 %v981, %v2614
    %v2616 = vand.u32 %v2615, 4294901760
    %2617 = vmatpush1.msra.mxu0 %v2616
    %2618 = vmatprep.subr.mxu0 0.0
    %v2619 = vand.u32 %v982, 4294901760
    %v2620 = vsub.f32 %v982, %v2619
    %v2621 = vand.u32 %v2620, 4294901760
    %2622 = vmatpush1.msra.mxu0 %v2621
    %2623 = vmatprep.subr.mxu0 0.0
    %v2624 = vand.u32 %v983, 4294901760
    %v2625 = vsub.f32 %v983, %v2624
    %v2626 = vand.u32 %v2625, 4294901760
    %2627 = vmatpush1.msra.mxu0 %v2626
    %v2628 = vand.u32 %v33, 4294901760
    %2629 = vmatprep.mubr.f32.mxu0 %v2628
    %v2630 = vand.u32 %v32, 4294901760
    %2631 = vmatmul.mubr.f32.gmra.mrb[0].mxu0 %v2630
    %v2632 = vpop.f32.mrb[0].mxu0
    %v2633 = vadd.f32 %v2465, %v2632
    %v2634 = vpop.f32.mrb[0].mxu0
    %2635 = vdwg.mxu0
    %2636 = vmatprep.subr.mxu0 0.0
    %v2637 = vand.u32 %v952, 4294901760
    %2638 = vmatpush1.msra.mxu0 %v2637
    %2639 = vmatprep.subr.mxu0 0.0
    %v2640 = vand.u32 %v953, 4294901760
    %2641 = vmatpush1.msra.mxu0 %v2640
    %2642 = vmatprep.subr.mxu0 0.0
    %v2643 = vand.u32 %v954, 4294901760
    %2644 = vmatpush1.msra.mxu0 %v2643
    %2645 = vmatprep.subr.mxu0 0.0
    %v2646 = vand.u32 %v955, 4294901760
    %2647 = vmatpush1.msra.mxu0 %v2646
    %2648 = vmatprep.subr.mxu0 0.0
    %v2649 = vand.u32 %v956, 4294901760
    %2650 = vmatpush1.msra.mxu0 %v2649
    %2651 = vmatprep.subr.mxu0 0.0
    %v2652 = vand.u32 %v957, 4294901760
    %2653 = vmatpush1.msra.mxu0 %v2652
    %2654 = vmatprep.subr.mxu0 0.0
    %v2655 = vand.u32 %v958, 4294901760
    %2656 = vmatpush1.msra.mxu0 %v2655
    %2657 = vmatprep.subr.mxu0 0.0
    %v2658 = vand.u32 %v959, 4294901760
    %2659 = vmatpush1.msra.mxu0 %v2658
    %2660 = vmatprep.subr.mxu0 0.0
    %v2661 = vand.u32 %v960, 4294901760
    %2662 = vmatpush1.msra.mxu0 %v2661
    %2663 = vmatprep.subr.mxu0 0.0
    %v2664 = vand.u32 %v961, 4294901760
    %2665 = vmatpush1.msra.mxu0 %v2664
    %2666 = vmatprep.subr.mxu0 0.0
    %v2667 = vand.u32 %v962, 4294901760
    %2668 = vmatpush1.msra.mxu0 %v2667
    %2669 = vmatprep.subr.mxu0 0.0
    %v2670 = vand.u32 %v963, 4294901760
    %2671 = vmatpush1.msra.mxu0 %v2670
    %2672 = vmatprep.subr.mxu0 0.0
    %v2673 = vand.u32 %v964, 4294901760
    %2674 = vmatpush1.msra.mxu0 %v2673
    %2675 = vmatprep.subr.mxu0 0.0
    %v2676 = vand.u32 %v965, 4294901760
    %2677 = vmatpush1.msra.mxu0 %v2676
    %2678 = vmatprep.subr.mxu0 0.0
    %v2679 = vand.u32 %v966, 4294901760
    %2680 = vmatpush1.msra.mxu0 %v2679
    %2681 = vmatprep.subr.mxu0 0.0
    %v2682 = vand.u32 %v967, 4294901760
    %2683 = vmatpush1.msra.mxu0 %v2682
    %2684 = vmatprep.subr.mxu0 0.0
    %v2685 = vand.u32 %v968, 4294901760
    %2686 = vmatpush1.msra.mxu0 %v2685
    %2687 = vmatprep.subr.mxu0 0.0
    %v2688 = vand.u32 %v969, 4294901760
    %2689 = vmatpush1.msra.mxu0 %v2688
    %2690 = vmatprep.subr.mxu0 0.0
    %v2691 = vand.u32 %v970, 4294901760
    %2692 = vmatpush1.msra.mxu0 %v2691
    %2693 = vmatprep.subr.mxu0 0.0
    %v2694 = vand.u32 %v971, 4294901760
    %2695 = vmatpush1.msra.mxu0 %v2694
    %2696 = vmatprep.subr.mxu0 0.0
    %v2697 = vand.u32 %v972, 4294901760
    %2698 = vmatpush1.msra.mxu0 %v2697
    %2699 = vmatprep.subr.mxu0 0.0
    %v2700 = vand.u32 %v973, 4294901760
    %2701 = vmatpush1.msra.mxu0 %v2700
    %2702 = vmatprep.subr.mxu0 0.0
    %v2703 = vand.u32 %v974, 4294901760
    %2704 = vmatpush1.msra.mxu0 %v2703
    %2705 = vmatprep.subr.mxu0 0.0
    %v2706 = vand.u32 %v975, 4294901760
    %2707 = vmatpush1.msra.mxu0 %v2706
    %2708 = vmatprep.subr.mxu0 0.0
    %v2709 = vand.u32 %v976, 4294901760
    %2710 = vmatpush1.msra.mxu0 %v2709
    %2711 = vmatprep.subr.mxu0 0.0
    %v2712 = vand.u32 %v977, 4294901760
    %2713 = vmatpush1.msra.mxu0 %v2712
    %2714 = vmatprep.subr.mxu0 0.0
    %v2715 = vand.u32 %v978, 4294901760
    %2716 = vmatpush1.msra.mxu0 %v2715
    %2717 = vmatprep.subr.mxu0 0.0
    %v2718 = vand.u32 %v979, 4294901760
    %2719 = vmatpush1.msra.mxu0 %v2718
    %2720 = vmatprep.subr.mxu0 0.0
    %v2721 = vand.u32 %v980, 4294901760
    %2722 = vmatpush1.msra.mxu0 %v2721
    %2723 = vmatprep.subr.mxu0 0.0
    %v2724 = vand.u32 %v981, 4294901760
    %2725 = vmatpush1.msra.mxu0 %v2724
    %2726 = vmatprep.subr.mxu0 0.0
    %v2727 = vand.u32 %v982, 4294901760
    %2728 = vmatpush1.msra.mxu0 %v2727
    %2729 = vmatprep.subr.mxu0 0.0
    %v2730 = vand.u32 %v983, 4294901760
    %2731 = vmatpush1.msra.mxu0 %v2730
    %v2732 = vand.u32 %v33, 4294901760
    %2733 = vmatprep.mubr.f32.mxu0 %v2732
    %v2734 = vand.u32 %v32, 4294901760
    %2735 = vmatmul.mubr.f32.gmra.mrb[0].mxu0 %v2734
    %v2736 = vpop.f32.mrb[0].mxu0
    %v2737 = vadd.f32 %v2633, %v2736
    %v2738 = vpop.f32.mrb[0].mxu0
    %2739 = vdwg.mxu0
    %v2740 = vld [vmem:[%s7] sm:$0x1]
    %v2742 = vlaneseq
    %v2743 = vshrl.u32 %v2742, 7
    %v2744 = vsub.s32 0, %v2743
    %v2745 = vrot.slane %v2740, %v2744
    %v2747 = vadd.f32 %v2737, %v2745
    %vm2748 = vcmask 39936
    %2749 = vst.msk [vmem:[#allocation2] sm:$0xff] %vm2748, %v2747
    // Predicated region
    $region34: #{tpu_custom_call.1} parent=1 // pred_check
      _
    $region35: #{tpu_custom_call.1} parent=1 // pred_check_branch
      %2751 = sbr.rel (0) target = $region37
    $region36: #{tpu_custom_call.1} parent=1 // pred_region
      _
    $region37: #{tpu_custom_call.1} parent=1 // pred_fallthru
      _
    // Predicated region
    $region38: #{tpu_custom_call.1} parent=1 // pred_check
      _
    $region39: #{tpu_custom_call.1} parent=1 // pred_check_branch
      %2753 = sbr.rel (0) target = $region41
    $region40: #{tpu_custom_call.1} parent=1 // pred_region
      %s2755 = ssub.s32 128, 128
      %2756 = vsyncadd [#allocation3], %s2755
      %s2758 = sshll.u32 [#allocation2], 4
      %s2759 = int_to_ptr.vmem [resolvable:$true] %s2758
      %2761 = dma.vmem_to_hbm [thread:$0]  %s2759, 128, %s9, [#allocation3]
    $region41: #{tpu_custom_call.1} parent=1 // pred_fallthru
      _
    // Predicated region
    $region42: #{tpu_custom_call.1} parent=1 // pred_check
      _
    $region43: #{tpu_custom_call.1} parent=1 // pred_check_branch
      %2763 = sbr.rel (0) target = $region45
    $region44: #{tpu_custom_call.1} parent=1 // pred_region
      _
    $region45: #{tpu_custom_call.1} parent=1 // pred_fallthru
      _
    // Predicated region
    $region46: #{tpu_custom_call.1} parent=1 // pred_check
      _
    $region47: #{tpu_custom_call.1} parent=1 // pred_check_branch
      %2765 = sbr.rel (0) target = $region49
    $region48: #{tpu_custom_call.1} parent=1 // pred_region
      %2766 = dma.done [#allocation3], 128
    $region49: #{tpu_custom_call.1} parent=1 // pred_fallthru
      _
    %2767 = vsyncpa [#allocation3], 1

</llo_original>
